<compile_context>
chip_gen: v5e
topology: v5e:2x2
jax: 0.10.0
libtpu: 0.0.40
codegen_flags: <defaults>
</compile_context>

<pallas_src>
import numpy as np
import jax
import jax.numpy as jnp
from jax import lax
from jax.experimental import pallas as pl
from jax.experimental.pallas import tpu as pltpu

EPS = 1e-5


def _resblock_kernel(x_ref, B1_ref, b1_ref, B2_ref, b2_ref, out_ref):
    """Fused ResidualBlock forward for one batch element.

    x_ref   : (1, D, H*W*C)       channels-last activations, H/W/C flattened (lane-dense)
    B*_ref  : (3, H*W*C, H*W*C)   per-depth-tap conv matrices (eval-BN folded in)
    b*_ref  : (1, H*W*C)          folded bias, broadcast over the H*W plane
    out_ref : (1, D, H*W*C)
    """
    _, D, HWC = x_ref.shape

    # Banded (D, D) shift matrices implementing the +-1 depth tap with zero padding:
    #   (s_up @ src)[z] = src[z-1]  (zero row at z=0)
    #   (s_dn @ src)[z] = src[z+1]  (zero row at z=D-1)
    rows = lax.broadcasted_iota(jnp.int32, (D, D), 0)
    cols = lax.broadcasted_iota(jnp.int32, (D, D), 1)
    s_up = (cols == rows - 1).astype(jnp.float32)
    s_dn = (cols == rows + 1).astype(jnp.float32)

    def conv3x3x3(src, B_ref):
        # src: (D, HWC).  B_ref[kd] carries the whole (zero-padded) H/W stencil for
        # depth tap kd-1, so the conv is three accumulating MXU dots.
        acc = jnp.dot(src, B_ref[1], preferred_element_type=jnp.float32)
        src_m = jnp.dot(s_up, src, preferred_element_type=jnp.float32)
        acc = acc + jnp.dot(src_m, B_ref[0], preferred_element_type=jnp.float32)
        src_p = jnp.dot(s_dn, src, preferred_element_type=jnp.float32)
        acc = acc + jnp.dot(src_p, B_ref[2], preferred_element_type=jnp.float32)
        return acc

    x = x_ref[0]                                                # (D, HWC) f32

    # conv1 (+ folded BN1) + ReLU.  Dropout (p=0.6) is identity in eval mode.
    h = jnp.maximum(conv3x3x3(x, B1_ref) + b1_ref[...], 0.0)

    # conv2 (+ folded BN2) + residual (re-read from the ref) + ReLU.
    y = conv3x3x3(h, B2_ref) + b2_ref[...] + x_ref[0]
    out_ref[0] = jnp.maximum(y, 0.0).astype(out_ref.dtype)


def residual_block_forward(x_ncdhw, kparams):
    """ResidualBlock.forward (eval mode) on an NCDHW input tensor."""
    N, C, D, H, W = x_ncdhw.shape
    HWC = H * W * C
    # NCDHW -> (N, D, H*W*C): channels-last with a wide, lane-dense minor dim.
    x = jnp.transpose(x_ncdhw, (0, 2, 3, 4, 1)).reshape(N, D, HWC).astype(jnp.float32)

    out = pl.pallas_call(
        _resblock_kernel,
        out_shape=jax.ShapeDtypeStruct((N, D, HWC), jnp.float32),
        grid=(N,),
        in_specs=[
            pl.BlockSpec((1, D, HWC), lambda n: (n, 0, 0)),
            pl.BlockSpec((3, HWC, HWC), lambda n: (0, 0, 0)),
            pl.BlockSpec((1, HWC), lambda n: (0, 0)),
            pl.BlockSpec((3, HWC, HWC), lambda n: (0, 0, 0)),
            pl.BlockSpec((1, HWC), lambda n: (0, 0)),
        ],
        out_specs=pl.BlockSpec((1, D, HWC), lambda n: (n, 0, 0)),
        compiler_params=pltpu.CompilerParams(
            dimension_semantics=("parallel",),       # batch elems independent (v7x 2 TCs)
            vmem_limit_bytes=32 * 1024 * 1024,       # explicit budget; ~3 MiB actually used
        ),
    )(x, kparams["B1"], kparams["b1"], kparams["B2"], kparams["b2"])

    return jnp.transpose(out.reshape(N, D, H, W, C), (0, 4, 1, 2, 3))  # back to NCDHW


# ----------------------------- parameter preparation -----------------------------

def _fold_bn(w_dhwio, b, gamma, beta, rmean, rvar):
    # BN(conv(x)+b) in eval mode == conv(x, w*scale) + ((b-rmean)*scale + beta)
    scale = gamma / jnp.sqrt(rvar + EPS)
    return w_dhwio * scale, (b - rmean) * scale + beta


def _build_depth_tap_matrices(w_fold_dhwio, H, W):
    """Fold the 3x3 H/W stencil (with its zero padding) into dense matrices.

    Returns B of shape (3, H*W*C, H*W*C) with
      B[kd, (yi*W+xi)*C + ci, (y*W+x)*C + co] = w[kd, yi-y+1, xi-x+1, ci, co]
    so that  out[z, y, x, co] = sum_kd (src[z+kd-1] @ B[kd])[(y*W+x)*C + co].
    """
    w = np.asarray(w_fold_dhwio, np.float32)            # (3, 3, 3, Cin, Cout) DHWIO
    C = w.shape[-1]
    HWC = H * W * C
    B = np.zeros((3, HWC, HWC), np.float32)
    for kd in range(3):
        for ky in range(3):
            dy = ky - 1
            for kx in range(3):
                dx = kx - 1
                for y in range(H):
                    yi = y + dy
                    if not 0 <= yi < H:
                        continue
                    for x in range(W):
                        xi = x + dx
                        if not 0 <= xi < W:
                            continue
                        r = (yi * W + xi) * C
                        c = (y * W + x) * C
                        B[kd, r:r + C, c:c + C] = w[kd, ky, kx]
    return jnp.asarray(B)


def prepare_kernel_params(params, H, W):
    C = params["w1_fold"].shape[-1]
    return dict(
        B1=_build_depth_tap_matrices(params["w1_fold"], H, W),
        B2=_build_depth_tap_matrices(params["w2_fold"], H, W),
        b1=jnp.tile(params["b1_fold"], H * W).reshape(1, H * W * C),
        b2=jnp.tile(params["b2_fold"], H * W).reshape(1, H * W * C),
    )


def init_params(key, C):
    ks = jax.random.split(key, 12)
    p = dict(
        w1=jax.random.normal(ks[0], (3, 3, 3, C, C), jnp.float32) * 0.1,  # DHWIO
        b1=jax.random.normal(ks[1], (C,), jnp.float32) * 0.1,
        g1=jax.random.uniform(ks[2], (C,), jnp.float32, 0.5, 1.5),
        be1=jax.random.normal(ks[3], (C,), jnp.float32) * 0.1,
        rm1=jax.random.normal(ks[4], (C,), jnp.float32) * 0.1,
        rv1=jax.random.uniform(ks[5], (C,), jnp.float32, 0.5, 1.5),
        w2=jax.random.normal(ks[6], (3, 3, 3, C, C), jnp.float32) * 0.1,
        b2=jax.random.normal(ks[7], (C,), jnp.float32) * 0.1,
        g2=jax.random.uniform(ks[8], (C,), jnp.float32, 0.5, 1.5),
        be2=jax.random.normal(ks[9], (C,), jnp.float32) * 0.1,
        rm2=jax.random.normal(ks[10], (C,), jnp.float32) * 0.1,
        rv2=jax.random.uniform(ks[11], (C,), jnp.float32, 0.5, 1.5),
    )
    p["w1_fold"], p["b1_fold"] = _fold_bn(p["w1"], p["b1"], p["g1"], p["be1"], p["rm1"], p["rv1"])
    p["w2_fold"], p["b2_fold"] = _fold_bn(p["w2"], p["b2"], p["g2"], p["be2"], p["rm2"], p["rv2"])
    return p


def reference_forward(x_ncdhw, p):
    """Pure-JAX (XLA) reference mirroring the PyTorch module in eval mode."""
    def conv(x, w_dhwio, b):
        w_oidhw = jnp.transpose(w_dhwio, (4, 3, 0, 1, 2))
        y = lax.conv_general_dilated(
            x, w_oidhw, window_strides=(1, 1, 1), padding="SAME",
            dimension_numbers=("NCDHW", "OIDHW", "NCDHW"))
        return y + b[None, :, None, None, None]

    def bn(x, gamma, beta, rmean, rvar):
        sh = (1, -1, 1, 1, 1)
        return (x - rmean.reshape(sh)) / jnp.sqrt(rvar.reshape(sh) + EPS) \
            * gamma.reshape(sh) + beta.reshape(sh)

    h = jnp.maximum(bn(conv(x_ncdhw, p["w1"], p["b1"]),
                       p["g1"], p["be1"], p["rm1"], p["rv1"]), 0.0)
    y = bn(conv(h, p["w2"], p["b2"]), p["g2"], p["be2"], p["rm2"], p["rv2"])
    return jnp.maximum(y + x_ncdhw, 0.0)


if __name__ == "__main__":
    key = jax.random.PRNGKey(0)
    k_x, k_p = jax.random.split(key)

    # NCDHW, in_out_channels_res = 4; H*W*C = 256 (exactly 2 lane tiles).
    N, C, D, H, W = 2, 4, 8, 8, 8
    x = jax.random.normal(k_x, (N, C, D, H, W), jnp.float32)
    params = init_params(k_p, C)
    kparams = prepare_kernel_params(params, H, W)

    out = jax.block_until_ready(residual_block_forward(x, kparams))
    ref = jax.block_until_ready(reference_forward(x, params))

    # Tolerance accommodates MXU multi-pass f32 matmul rounding vs the XLA conv path.
    np.testing.assert_allclose(np.asarray(out), np.asarray(ref), rtol=5e-3, atol=5e-3)
    assert out.shape == (N, C, D, H, W) and out.dtype == jnp.float32

    print("KERNEL_OK")
</pallas_src>

<mosaic_0001>
module attributes {stable_mosaic.version = 11 : i64} {
  func.func @_resblock_kernel(%arg0: i32, %arg1: memref<1x8x256xf32, #tpu.memory_space<vmem>>, %arg2: memref<3x256x256xf32, #tpu.memory_space<vmem>>, %arg3: memref<1x256xf32, #tpu.memory_space<vmem>>, %arg4: memref<3x256x256xf32, #tpu.memory_space<vmem>>, %arg5: memref<1x256xf32, #tpu.memory_space<vmem>>, %arg6: memref<1x8x256xf32, #tpu.memory_space<vmem>>) attributes {dimension_semantics = [#tpu.dimension_semantics<parallel>], iteration_bounds = array<i64: 2>, scalar_prefetch = 0 : i64, scratch_operands = 0 : i64, tpu.core_type = #tpu.core_type<tc>, window_params = [{transform_indices = @transform_0, window_bounds = array<i64: 1, 8, 256>}, {pipeline_mode = #tpu.pipeline_mode<synchronous>, transform_indices = @transform_1, window_bounds = array<i64: 3, 256, 256>}, {pipeline_mode = #tpu.pipeline_mode<synchronous>, transform_indices = @transform_2, window_bounds = array<i64: 1, 256>}, {pipeline_mode = #tpu.pipeline_mode<synchronous>, transform_indices = @transform_3, window_bounds = array<i64: 3, 256, 256>}, {pipeline_mode = #tpu.pipeline_mode<synchronous>, transform_indices = @transform_4, window_bounds = array<i64: 1, 256>}, {transform_indices = @transform_5, window_bounds = array<i64: 1, 8, 256>}]} {
    %0 = tpu.iota {dimensions = array<i32: 0>} : vector<8x8xi32>
    %1 = tpu.iota {dimensions = array<i32: 1>} : vector<8x8xi32>
    %c1_i32 = arith.constant 1 : i32
    %2 = vector.broadcast %c1_i32 : i32 to vector<8x8xi32>
    %3 = arith.subi %0, %2 : vector<8x8xi32>
    %4 = arith.cmpi eq, %1, %3 : vector<8x8xi32>
    %5 = arith.extui %4 : vector<8x8xi1> to vector<8x8xi32>
    %6 = arith.sitofp %5 : vector<8x8xi32> to vector<8x8xf32>
    %c1_i32_0 = arith.constant 1 : i32
    %7 = vector.broadcast %c1_i32_0 : i32 to vector<8x8xi32>
    %8 = arith.addi %0, %7 : vector<8x8xi32>
    %9 = arith.cmpi eq, %1, %8 : vector<8x8xi32>
    %10 = arith.extui %9 : vector<8x8xi1> to vector<8x8xi32>
    %11 = arith.sitofp %10 : vector<8x8xi32> to vector<8x8xf32>
    %c0 = arith.constant 0 : index
    %c0_1 = arith.constant 0 : index
    %c0_2 = arith.constant 0 : index
    %12 = vector.load %arg1[%c0, %c0_1, %c0_2] : memref<1x8x256xf32, #tpu.memory_space<vmem>>, vector<1x8x256xf32>
    %13 = vector.shape_cast %12 : vector<1x8x256xf32> to vector<8x256xf32>
    %c1 = arith.constant 1 : index
    %c0_3 = arith.constant 0 : index
    %c0_4 = arith.constant 0 : index
    %14 = vector.load %arg2[%c1, %c0_3, %c0_4] : memref<3x256x256xf32, #tpu.memory_space<vmem>>, vector<1x256x256xf32>
    %15 = vector.shape_cast %14 : vector<1x256x256xf32> to vector<256x256xf32>
    %cst = arith.constant dense<0.000000e+00> : vector<8x256xf32>
    %16 = tpu.matmul %13, %15, %cst {dimension_numbers = #tpu.dot_dimension_numbers<[1], [0], [0], [1], [0, 0, 1, 1], [], []>} : vector<8x256xf32>, vector<256x256xf32>, vector<8x256xf32> -> vector<8x256xf32>
    %cst_5 = arith.constant dense<0.000000e+00> : vector<8x256xf32>
    %17 = tpu.matmul %6, %13, %cst_5 {dimension_numbers = #tpu.dot_dimension_numbers<[1], [0], [0], [1], [0, 0, 1, 1], [], []>} : vector<8x8xf32>, vector<8x256xf32>, vector<8x256xf32> -> vector<8x256xf32>
    %c0_6 = arith.constant 0 : index
    %c0_7 = arith.constant 0 : index
    %c0_8 = arith.constant 0 : index
    %18 = vector.load %arg2[%c0_6, %c0_7, %c0_8] : memref<3x256x256xf32, #tpu.memory_space<vmem>>, vector<1x256x256xf32>
    %19 = vector.shape_cast %18 : vector<1x256x256xf32> to vector<256x256xf32>
    %cst_9 = arith.constant dense<0.000000e+00> : vector<8x256xf32>
    %20 = tpu.matmul %17, %19, %cst_9 {dimension_numbers = #tpu.dot_dimension_numbers<[1], [0], [0], [1], [0, 0, 1, 1], [], []>} : vector<8x256xf32>, vector<256x256xf32>, vector<8x256xf32> -> vector<8x256xf32>
    %21 = arith.addf %16, %20 : vector<8x256xf32>
    %cst_10 = arith.constant dense<0.000000e+00> : vector<8x256xf32>
    %22 = tpu.matmul %11, %13, %cst_10 {dimension_numbers = #tpu.dot_dimension_numbers<[1], [0], [0], [1], [0, 0, 1, 1], [], []>} : vector<8x8xf32>, vector<8x256xf32>, vector<8x256xf32> -> vector<8x256xf32>
    %c2 = arith.constant 2 : index
    %c0_11 = arith.constant 0 : index
    %c0_12 = arith.constant 0 : index
    %23 = vector.load %arg2[%c2, %c0_11, %c0_12] : memref<3x256x256xf32, #tpu.memory_space<vmem>>, vector<1x256x256xf32>
    %24 = vector.shape_cast %23 : vector<1x256x256xf32> to vector<256x256xf32>
    %cst_13 = arith.constant dense<0.000000e+00> : vector<8x256xf32>
    %25 = tpu.matmul %22, %24, %cst_13 {dimension_numbers = #tpu.dot_dimension_numbers<[1], [0], [0], [1], [0, 0, 1, 1], [], []>} : vector<8x256xf32>, vector<256x256xf32>, vector<8x256xf32> -> vector<8x256xf32>
    %26 = arith.addf %21, %25 : vector<8x256xf32>
    %c0_14 = arith.constant 0 : index
    %c0_15 = arith.constant 0 : index
    %27 = vector.load %arg3[%c0_14, %c0_15] : memref<1x256xf32, #tpu.memory_space<vmem>>, vector<1x256xf32>
    %28 = vector.broadcast %27 : vector<1x256xf32> to vector<8x256xf32>
    %29 = arith.addf %26, %28 : vector<8x256xf32>
    %cst_16 = arith.constant 0.000000e+00 : f32
    %30 = vector.broadcast %cst_16 : f32 to vector<8x256xf32>
    %31 = arith.maximumf %29, %30 : vector<8x256xf32>
    %c1_17 = arith.constant 1 : index
    %c0_18 = arith.constant 0 : index
    %c0_19 = arith.constant 0 : index
    %32 = vector.load %arg4[%c1_17, %c0_18, %c0_19] : memref<3x256x256xf32, #tpu.memory_space<vmem>>, vector<1x256x256xf32>
    %33 = vector.shape_cast %32 : vector<1x256x256xf32> to vector<256x256xf32>
    %cst_20 = arith.constant dense<0.000000e+00> : vector<8x256xf32>
    %34 = tpu.matmul %31, %33, %cst_20 {dimension_numbers = #tpu.dot_dimension_numbers<[1], [0], [0], [1], [0, 0, 1, 1], [], []>} : vector<8x256xf32>, vector<256x256xf32>, vector<8x256xf32> -> vector<8x256xf32>
    %cst_21 = arith.constant dense<0.000000e+00> : vector<8x256xf32>
    %35 = tpu.matmul %6, %31, %cst_21 {dimension_numbers = #tpu.dot_dimension_numbers<[1], [0], [0], [1], [0, 0, 1, 1], [], []>} : vector<8x8xf32>, vector<8x256xf32>, vector<8x256xf32> -> vector<8x256xf32>
    %c0_22 = arith.constant 0 : index
    %c0_23 = arith.constant 0 : index
    %c0_24 = arith.constant 0 : index
    %36 = vector.load %arg4[%c0_22, %c0_23, %c0_24] : memref<3x256x256xf32, #tpu.memory_space<vmem>>, vector<1x256x256xf32>
    %37 = vector.shape_cast %36 : vector<1x256x256xf32> to vector<256x256xf32>
    %cst_25 = arith.constant dense<0.000000e+00> : vector<8x256xf32>
    %38 = tpu.matmul %35, %37, %cst_25 {dimension_numbers = #tpu.dot_dimension_numbers<[1], [0], [0], [1], [0, 0, 1, 1], [], []>} : vector<8x256xf32>, vector<256x256xf32>, vector<8x256xf32> -> vector<8x256xf32>
    %39 = arith.addf %34, %38 : vector<8x256xf32>
    %cst_26 = arith.constant dense<0.000000e+00> : vector<8x256xf32>
    %40 = tpu.matmul %11, %31, %cst_26 {dimension_numbers = #tpu.dot_dimension_numbers<[1], [0], [0], [1], [0, 0, 1, 1], [], []>} : vector<8x8xf32>, vector<8x256xf32>, vector<8x256xf32> -> vector<8x256xf32>
    %c2_27 = arith.constant 2 : index
    %c0_28 = arith.constant 0 : index
    %c0_29 = arith.constant 0 : index
    %41 = vector.load %arg4[%c2_27, %c0_28, %c0_29] : memref<3x256x256xf32, #tpu.memory_space<vmem>>, vector<1x256x256xf32>
    %42 = vector.shape_cast %41 : vector<1x256x256xf32> to vector<256x256xf32>
    %cst_30 = arith.constant dense<0.000000e+00> : vector<8x256xf32>
    %43 = tpu.matmul %40, %42, %cst_30 {dimension_numbers = #tpu.dot_dimension_numbers<[1], [0], [0], [1], [0, 0, 1, 1], [], []>} : vector<8x256xf32>, vector<256x256xf32>, vector<8x256xf32> -> vector<8x256xf32>
    %44 = arith.addf %39, %43 : vector<8x256xf32>
    %c0_31 = arith.constant 0 : index
    %c0_32 = arith.constant 0 : index
    %45 = vector.load %arg5[%c0_31, %c0_32] : memref<1x256xf32, #tpu.memory_space<vmem>>, vector<1x256xf32>
    %46 = vector.broadcast %45 : vector<1x256xf32> to vector<8x256xf32>
    %47 = arith.addf %44, %46 : vector<8x256xf32>
    %c0_33 = arith.constant 0 : index
    %c0_34 = arith.constant 0 : index
    %c0_35 = arith.constant 0 : index
    %48 = vector.load %arg1[%c0_33, %c0_34, %c0_35] : memref<1x8x256xf32, #tpu.memory_space<vmem>>, vector<1x8x256xf32>
    %49 = vector.shape_cast %48 : vector<1x8x256xf32> to vector<8x256xf32>
    %50 = arith.addf %47, %49 : vector<8x256xf32>
    %cst_36 = arith.constant 0.000000e+00 : f32
    %51 = vector.broadcast %cst_36 : f32 to vector<8x256xf32>
    %52 = arith.maximumf %50, %51 : vector<8x256xf32>
    %c0_37 = arith.constant 0 : index
    %c0_38 = arith.constant 0 : index
    %c0_39 = arith.constant 0 : index
    %53 = vector.load %arg6[%c0_37, %c0_38, %c0_39] : memref<1x8x256xf32, #tpu.memory_space<vmem>>, vector<1x8x256xf32>
    %54 = vector.shape_cast %53 : vector<1x8x256xf32> to vector<8x256xf32>
    %55 = vector.shape_cast %52 : vector<8x256xf32> to vector<1x8x256xf32>
    tpu.vector_store %arg6[%c0_37, %c0_38, %c0_39], %55 {strides = array<i32>} : memref<1x8x256xf32, #tpu.memory_space<vmem>>, vector<1x8x256xf32>,
    return
  }
  func.func @transform_0(%arg0: i32) -> (i32, i32, i32) {
    %c0_i32 = arith.constant 0 : i32
    %c0_i32_0 = arith.constant 0 : i32
    %c0_i32_1 = arith.constant 0 : i32
    return %arg0, %c0_i32, %c0_i32_0 : i32, i32, i32
  }
  func.func @transform_1(%arg0: i32) -> (i32, i32, i32) {
    %c0_i32 = arith.constant 0 : i32
    %c0_i32_0 = arith.constant 0 : i32
    %c0_i32_1 = arith.constant 0 : i32
    %c0_i32_2 = arith.constant 0 : i32
    return %c0_i32, %c0_i32_0, %c0_i32_1 : i32, i32, i32
  }
  func.func @transform_2(%arg0: i32) -> (i32, i32) {
    %c0_i32 = arith.constant 0 : i32
    %c0_i32_0 = arith.constant 0 : i32
    %c0_i32_1 = arith.constant 0 : i32
    return %c0_i32, %c0_i32_0 : i32, i32
  }
  func.func @transform_3(%arg0: i32) -> (i32, i32, i32) {
    %c0_i32 = arith.constant 0 : i32
    %c0_i32_0 = arith.constant 0 : i32
    %c0_i32_1 = arith.constant 0 : i32
    %c0_i32_2 = arith.constant 0 : i32
    return %c0_i32, %c0_i32_0, %c0_i32_1 : i32, i32, i32
  }
  func.func @transform_4(%arg0: i32) -> (i32, i32) {
    %c0_i32 = arith.constant 0 : i32
    %c0_i32_0 = arith.constant 0 : i32
    %c0_i32_1 = arith.constant 0 : i32
    return %c0_i32, %c0_i32_0 : i32, i32
  }
  func.func @transform_5(%arg0: i32) -> (i32, i32, i32) {
    %c0_i32 = arith.constant 0 : i32
    %c0_i32_0 = arith.constant 0 : i32
    %c0_i32_1 = arith.constant 0 : i32
    return %arg0, %c0_i32, %c0_i32_0 : i32, i32, i32
  }
}

</mosaic_0001>

<llo_original>
// kernel: tpu_custom_call.1
$region0: #{tpu_custom_call.1}
  #allocation0 [shape = 'u32[]', space=smem, size = 0x4, offset = 0x4, fixed_abs, tag = 'smem constant byte address 0x4 - core index']
  #allocation1 [shape = 'u32[72,128]{1,0:T(1,128)}', space=vmem, size = 0x9000, scoped, tag = 'internal scratch']
  %s0 = inlined_call_operand.hbm [shape: f32[2,8,256], index: 0, kind: input, shape index: {}]
  %s1 = inlined_call_operand.hbm [shape: f32[3,256,256], index: 1, kind: input, shape index: {}]
  %s2 = inlined_call_operand.hbm [shape: f32[1,256], index: 2, kind: input, shape index: {}]
  %s3 = inlined_call_operand.hbm [shape: f32[3,256,256], index: 3, kind: input, shape index: {}]
  %s4 = inlined_call_operand.vmem [shape: f32[1,256], index: 4, kind: input, shape index: {}]
  %s5 = inlined_call_operand.hbm [shape: f32[2,8,256], index: 5, kind: output, shape index: {}]
  %s6 = sld [smem:[#allocation0]]
  $region69: #{tpu_custom_call.1} parent=0
    _
  %s8 = ssub.s32 1, %s6
  %s9 = scalar_select 0, %s8, %s6
  $region1: #{tpu_custom_call.1} parent=0
    #allocation2 [shape = 'u8[16384]{0}', space=vmem, size = 0x4000, scoped, tag = 'input window, operand 0']
    #allocation3 [shape = 's32[2]{0}', space=sflag, size = 0x8, scoped, tag = 'scoped memory for tpu_custom_call.1']
    #allocation4 [shape = 's32[2]{0}', space=sflag, size = 0x8, scoped, tag = 'scoped memory for tpu_custom_call.1']
    #allocation5 [shape = 'u8[786432]{0}', space=vmem, size = 0xc0000, scoped, tag = 'input window, operand 1, single buffered']
    #allocation6 [shape = 's32[1]{0}', space=sflag, size = 0x4, scoped, tag = 'scoped memory for tpu_custom_call.1']
    #allocation7 [shape = 'u8[1024]{0}', space=vmem, size = 0x400, scoped, tag = 'input window, operand 2, single buffered']
    #allocation8 [shape = 'u8[786432]{0}', space=vmem, size = 0xc0000, scoped, tag = 'input window, operand 3, single buffered']
    #allocation9 [shape = 's32[1]{0}', space=sflag, size = 0x4, scoped, tag = 'scoped memory for tpu_custom_call.1']
    #allocation10 [shape = 'u8[16384]{0}', space=vmem, size = 0x4000, scoped, tag = 'output window, operand 0']
    %10 = vsyncpa [#allocation3], 0
    %s11 = scalar_lea.sflag [#allocation3], 1
    %12 = vsyncpa %s11, 0
    %13 = vsyncpa [#allocation6], 0
    %14 = vsyncpa [#allocation9], 0
    %15 = vsyncpa [#allocation4], 0
    %s16 = scalar_lea.sflag [#allocation4], 1
    %17 = vsyncpa %s16, 0
    loop: start=0, step=1, limit=4
    $region2: #{tpu_custom_call.1} parent=1 // loop_pre_header
      _
    $region3: #{tpu_custom_call.1} parent=1 // loop_header
      %s19 = sphi 0, %s23
      %p20 = scmp.ge.s32.totalorder %s19, 4
      %s29 = sphi 0, %s31
      %s32 = sphi 0, %s29
      %s33 = sphi 0, %s32
      %s49 = sphi 0, %s33
      %s53 = sphi 0, %s53
      %s55 = sphi 0, %s53
      %s56 = sphi 0, %s55
      %s70 = sphi 0, %s56
      %s74 = sphi 0, %s74
      %s76 = sphi 0, %s74
      %s77 = sphi 0, %s76
      %s91 = sphi 0, %s77
      %s95 = sphi 0, %s95
      %s97 = sphi 0, %s95
      %s98 = sphi 0, %s97
      %s112 = sphi 0, %s98
      %s116 = sphi 0, %s116
      %s118 = sphi 0, %s116
      %s119 = sphi 0, %s118
      %s133 = sphi 0, %s119
      %s139 = sphi 0, %s141
      %s142 = sphi 0, %s139
      %s143 = sphi 0, %s142
      %s159 = sphi 0, %s143
    $region4: #{tpu_custom_call.1} parent=1 // loop_header_branch
      %22 = sbr.rel (%p20) target = $region8
    $region5: #{tpu_custom_call.1} parent=1 // loop_body
      %s24 = ssub.s32 %s19, 1
      %s25 = ssub.s32 %s19, 2
      %s26 = sadd.s32 %s19, 1
      %s27 = ssub.s32 %s19, %s26
      %p28 = scmp.eq.s32.totalorder %s27, 0
      %s30 = sadd.s32 %s29, 1
      %s31 = scalar_select %p28, %s29, %s30
      %p34 = pneg %p28
      %p35 = scmp.eq.s32.totalorder %s19, 1
      %p36 = por %p34, %p35
      %p37 = scmp.ne.s32.totalorder %s29, %s32
      %p38 = scmp.eq.s32.totalorder %s19, 0
      %p39 = por %p37, %p38
      %p40 = scmp.ne.s32.totalorder %s29, %s32
      %p41 = scmp.eq.s32.totalorder %s24, 1
      %p42 = por %p40, %p41
      %p43 = scmp.ne.s32.totalorder %s32, %s33
      %p44 = scmp.eq.s32.totalorder %s24, 0
      %p45 = por %p43, %p44
      %p46 = scmp.ne.s32.totalorder %s32, %s33
      %p47 = scmp.eq.s32.totalorder %s25, 1
      %p48 = por %p46, %p47
      %p50 = scmp.ne.s32.totalorder %s33, %s49
      %p51 = scmp.eq.s32.totalorder %s25, 0
      %p52 = por %p50, %p51
      %s54 = sadd.s32 %s53, 1
      %p57 = scmp.eq.s32.totalorder %s19, 1
      %p58 = scmp.ne.s32.totalorder %s53, %s55
      %p59 = scmp.eq.s32.totalorder %s19, 0
      %p60 = por %p58, %p59
      %p61 = scmp.ne.s32.totalorder %s53, %s55
      %p62 = scmp.eq.s32.totalorder %s24, 1
      %p63 = por %p61, %p62
      %p64 = scmp.ne.s32.totalorder %s55, %s56
      %p65 = scmp.eq.s32.totalorder %s24, 0
      %p66 = por %p64, %p65
      %p67 = scmp.ne.s32.totalorder %s55, %s56
      %p68 = scmp.eq.s32.totalorder %s25, 1
      %p69 = por %p67, %p68
      %p71 = scmp.ne.s32.totalorder %s56, %s70
      %p72 = scmp.eq.s32.totalorder %s25, 0
      %p73 = por %p71, %p72
      %s75 = sadd.s32 %s74, 1
      %p78 = scmp.eq.s32.totalorder %s19, 1
      %p79 = scmp.ne.s32.totalorder %s74, %s76
      %p80 = scmp.eq.s32.totalorder %s19, 0
      %p81 = por %p79, %p80
      %p82 = scmp.ne.s32.totalorder %s74, %s76
      %p83 = scmp.eq.s32.totalorder %s24, 1
      %p84 = por %p82, %p83
      %p85 = scmp.ne.s32.totalorder %s76, %s77
      %p86 = scmp.eq.s32.totalorder %s24, 0
      %p87 = por %p85, %p86
      %p88 = scmp.ne.s32.totalorder %s76, %s77
      %p89 = scmp.eq.s32.totalorder %s25, 1
      %p90 = por %p88, %p89
      %p92 = scmp.ne.s32.totalorder %s77, %s91
      %p93 = scmp.eq.s32.totalorder %s25, 0
      %p94 = por %p92, %p93
      %s96 = sadd.s32 %s95, 1
      %p99 = scmp.eq.s32.totalorder %s19, 1
      %p100 = scmp.ne.s32.totalorder %s95, %s97
      %p101 = scmp.eq.s32.totalorder %s19, 0
      %p102 = por %p100, %p101
      %p103 = scmp.ne.s32.totalorder %s95, %s97
      %p104 = scmp.eq.s32.totalorder %s24, 1
      %p105 = por %p103, %p104
      %p106 = scmp.ne.s32.totalorder %s97, %s98
      %p107 = scmp.eq.s32.totalorder %s24, 0
      %p108 = por %p106, %p107
      %p109 = scmp.ne.s32.totalorder %s97, %s98
      %p110 = scmp.eq.s32.totalorder %s25, 1
      %p111 = por %p109, %p110
      %p113 = scmp.ne.s32.totalorder %s98, %s112
      %p114 = scmp.eq.s32.totalorder %s25, 0
      %p115 = por %p113, %p114
      %s117 = sadd.s32 %s116, 1
      %p120 = scmp.eq.s32.totalorder %s19, 1
      %p121 = scmp.ne.s32.totalorder %s116, %s118
      %p122 = scmp.eq.s32.totalorder %s19, 0
      %p123 = por %p121, %p122
      %p124 = scmp.ne.s32.totalorder %s116, %s118
      %p125 = scmp.eq.s32.totalorder %s24, 1
      %p126 = por %p124, %p125
      %p127 = scmp.ne.s32.totalorder %s118, %s119
      %p128 = scmp.eq.s32.totalorder %s24, 0
      %p129 = por %p127, %p128
      %p130 = scmp.ne.s32.totalorder %s118, %s119
      %p131 = scmp.eq.s32.totalorder %s25, 1
      %p132 = por %p130, %p131
      %p134 = scmp.ne.s32.totalorder %s119, %s133
      %p135 = scmp.eq.s32.totalorder %s25, 0
      %p136 = por %p134, %p135
      %s137 = ssub.s32 %s19, %s26
      %p138 = scmp.eq.s32.totalorder %s137, 0
      %s140 = sadd.s32 %s139, 1
      %s141 = scalar_select %p138, %s139, %s140
      %p144 = pneg %p138
      %p145 = scmp.eq.s32.totalorder %s19, 1
      %p146 = por %p144, %p145
      %p147 = scmp.ne.s32.totalorder %s139, %s142
      %p148 = scmp.eq.s32.totalorder %s19, 0
      %p149 = por %p147, %p148
      %p150 = scmp.ne.s32.totalorder %s139, %s142
      %p151 = scmp.eq.s32.totalorder %s24, 1
      %p152 = por %p150, %p151
      %p153 = scmp.ne.s32.totalorder %s142, %s143
      %p154 = scmp.eq.s32.totalorder %s24, 0
      %p155 = por %p153, %p154
      %p156 = scmp.ne.s32.totalorder %s142, %s143
      %p157 = scmp.eq.s32.totalorder %s25, 1
      %p158 = por %p156, %p157
      %p160 = scmp.ne.s32.totalorder %s143, %s159
      %p161 = scmp.eq.s32.totalorder %s25, 0
      %p162 = por %p160, %p161
      %p163 = scmp.le.s32.totalorder 1, %s19
      %p164 = scmp.lt.s32.totalorder %s19, 3
      %p165 = pnand %p163, %p164
      %p166 = pneg %p165
      // Predicated region
      $region9: #{tpu_custom_call.1} parent=5 // pred_check
        _
      $region10: #{tpu_custom_call.1} parent=5 // pred_check_branch
        %168 = sbr.rel (%p165) target = $region12
      $region11: #{tpu_custom_call.1} parent=5 // pred_region
        %s169 = ssub.s32 %s19, 1
        // Predicated region
        $region13: #{tpu_custom_call.1} parent=11 // pred_check
          %p170 = pneg %p66
        $region14: #{tpu_custom_call.1} parent=11 // pred_check_branch
          %172 = sbr.rel (%p170) target = $region16
        $region15: #{tpu_custom_call.1} parent=11 // pred_region
          %174 = vsyncadd [#allocation6], 0
          %s175 = sshll.u32 %s1, 4
          %s176 = int_to_ptr.hbm [resolvable:$true] %s175
          %s177 = sshll.u32 [#allocation5], 4
          %s178 = int_to_ptr.vmem [resolvable:$true] %s177
          %183 = dma.hbm_to_vmem [thread:$0]  %s176, 24576, %s178, [#allocation6], 256, 256, 16
        $region16: #{tpu_custom_call.1} parent=11 // pred_fallthru
          _
        // Predicated region
        $region17: #{tpu_custom_call.1} parent=11 // pred_check
          %p184 = pneg %p87
        $region18: #{tpu_custom_call.1} parent=11 // pred_check_branch
          %186 = sbr.rel (%p184) target = $region20
        $region19: #{tpu_custom_call.1} parent=11 // pred_region
          %188 = vsyncadd [#allocation6], 0
          %s190 = sshll.u32 %s2, 4
          %s191 = int_to_ptr.hbm [resolvable:$true] %s190
          %s192 = sshll.u32 [#allocation7], 4
          %s193 = int_to_ptr.vmem [resolvable:$true] %s192
          %195 = dma.hbm_to_vmem [thread:$0]  %s191, 32, %s193, [#allocation6]
        $region20: #{tpu_custom_call.1} parent=11 // pred_fallthru
          _
        // Predicated region
        $region21: #{tpu_custom_call.1} parent=11 // pred_check
          %p196 = pneg %p108
        $region22: #{tpu_custom_call.1} parent=11 // pred_check_branch
          %198 = sbr.rel (%p196) target = $region24
        $region23: #{tpu_custom_call.1} parent=11 // pred_region
          %200 = vsyncadd [#allocation9], 0
          %s201 = sshll.u32 %s3, 4
          %s202 = int_to_ptr.hbm [resolvable:$true] %s201
          %s203 = sshll.u32 [#allocation8], 4
          %s204 = int_to_ptr.vmem [resolvable:$true] %s203
          %209 = dma.hbm_to_vmem [thread:$0]  %s202, 24576, %s204, [#allocation9], 256, 256, 16
        $region24: #{tpu_custom_call.1} parent=11 // pred_fallthru
          _
        // Predicated region
        $region25: #{tpu_custom_call.1} parent=11 // pred_check
          %p210 = pneg %p129
        $region26: #{tpu_custom_call.1} parent=11 // pred_check_branch
          %212 = sbr.rel (%p210) target = $region28
        $region27: #{tpu_custom_call.1} parent=11 // pred_region
          _
        $region28: #{tpu_custom_call.1} parent=11 // pred_fallthru
          _
      $region12: #{tpu_custom_call.1} parent=5 // pred_fallthru
        _
      %p213 = scmp.lt.s32.totalorder %s19, 2
      // Predicated region
      $region29: #{tpu_custom_call.1} parent=5 // pred_check
        %p214 = pneg %p213
      $region30: #{tpu_custom_call.1} parent=5 // pred_check_branch
        %216 = sbr.rel (%p214) target = $region32
      $region31: #{tpu_custom_call.1} parent=5 // pred_region
        // Predicated region
        $region33: #{tpu_custom_call.1} parent=31 // pred_check
          %p217 = pneg %p39
        $region34: #{tpu_custom_call.1} parent=31 // pred_check_branch
          %219 = sbr.rel (%p217) target = $region36
        $region35: #{tpu_custom_call.1} parent=31 // pred_region
          %s220 = sand.u32 %s29, 1
          %s221 = scalar_lea.sflag [#allocation3], %s220
          %s222 = sand.u32 %s29, 1
          %s223 = smul.addr %s222, 16
          %s224 = scalar_lea.vmem [#allocation2], %s223
          %226 = vsyncadd %s221, 0
          %s227 = smul.addr %s19, 2
          %s228 = smul.addr %s227, 8
          %s229 = scalar_lea.hbm %s0, %s228
          %s231 = sshll.u32 %s229, 4
          %s232 = int_to_ptr.hbm [resolvable:$true] %s231
          %s233 = sshll.u32 %s224, 4
          %s234 = int_to_ptr.vmem [resolvable:$true] %s233
          %236 = dma.hbm_to_vmem [thread:$0]  %s232, 256, %s234, %s221
        $region36: #{tpu_custom_call.1} parent=31 // pred_fallthru
          _
      $region32: #{tpu_custom_call.1} parent=5 // pred_fallthru
        _
      %p237 = scmp.le.s32.totalorder 1, %s19
      %p238 = scmp.lt.s32.totalorder %s19, 3
      %p239 = pnand %p237, %p238
      %p240 = pneg %p239
      // Predicated region
      $region37: #{tpu_custom_call.1} parent=5 // pred_check
        _
      $region38: #{tpu_custom_call.1} parent=5 // pred_check_branch
        %242 = sbr.rel (%p239) target = $region40
      $region39: #{tpu_custom_call.1} parent=5 // pred_region
        %s243 = ssub.s32 %s19, 1
        %s244 = sand.u32 %s32, 1
        %s245 = scalar_lea.sflag [#allocation3], %s244
        %s246 = sand.u32 %s32, 1
        %s247 = smul.addr %s246, 16
        %s248 = scalar_lea.vmem [#allocation2], %s247
        // Predicated region
        $region41: #{tpu_custom_call.1} parent=39 // pred_check
          %p249 = pneg %p45
        $region42: #{tpu_custom_call.1} parent=39 // pred_check_branch
          %251 = sbr.rel (%p249) target = $region44
        $region43: #{tpu_custom_call.1} parent=39 // pred_region
          %253 = dma.done %s245, 256
        $region44: #{tpu_custom_call.1} parent=39 // pred_fallthru
          _
        // Predicated region
        $region45: #{tpu_custom_call.1} parent=39 // pred_check
          %p254 = pneg %p66
        $region46: #{tpu_custom_call.1} parent=39 // pred_check_branch
          %256 = sbr.rel (%p254) target = $region48
        $region47: #{tpu_custom_call.1} parent=39 // pred_region
          %258 = dma.done [#allocation6], 24576
        $region48: #{tpu_custom_call.1} parent=39 // pred_fallthru
          _
        // Predicated region
        $region49: #{tpu_custom_call.1} parent=39 // pred_check
          %p259 = pneg %p87
        $region50: #{tpu_custom_call.1} parent=39 // pred_check_branch
          %261 = sbr.rel (%p259) target = $region52
        $region51: #{tpu_custom_call.1} parent=39 // pred_region
          %263 = dma.done [#allocation6], 32
        $region52: #{tpu_custom_call.1} parent=39 // pred_fallthru
          _
        // Predicated region
        $region53: #{tpu_custom_call.1} parent=39 // pred_check
          %p264 = pneg %p108
        $region54: #{tpu_custom_call.1} parent=39 // pred_check_branch
          %266 = sbr.rel (%p264) target = $region56
        $region55: #{tpu_custom_call.1} parent=39 // pred_region
          %268 = dma.done [#allocation9], 24576
        $region56: #{tpu_custom_call.1} parent=39 // pred_fallthru
          _
        %s269 = sand.u32 %s32, 1
        %s270 = scalar_lea.sflag [#allocation3], %s269
        %s271 = sand.u32 %s32, 1
        %s272 = smul.addr %s271, 16
        %s273 = scalar_lea.vmem [#allocation2], %s272
        %p274 = pneg %p45
        %p275 = pneg %p42
        %p276 = pneg %p66
        %p277 = pneg %p63
        %p278 = pneg %p87
        %p279 = pneg %p84
        %p280 = pneg %p108
        %p281 = pneg %p105
        %p282 = pneg %p129
        %p283 = pneg %p126
        %p284 = pneg %p155
        %p285 = pneg %p152
        %s286 = sand.u32 %s142, 1
        %s287 = scalar_lea.sflag [#allocation4], %s286
        %s288 = sand.u32 %s142, 1
        %s289 = smul.addr %s288, 16
        %s290 = scalar_lea.vmem [#allocation10], %s289
        %v291 = vlaneseq
        %v292 = vshrl.u32 %v291, 7
        %v293 = vlaneseq
        %v294 = vand.u32 %v293, 127
        %v295 = vsub.s32 %v292, 1
        %vm296 = vcmp.eq.s32.totalorder %v294, %v295
        %v297 = vsel %vm296, 1, 0
        %v298 = vcvt.s32.f32 %v297
        %v299 = vadd.s32 %v292, 1
        %vm300 = vcmp.eq.s32.totalorder %v294, %v299
        %v301 = vsel %vm300, 1, 0
        %v302 = vcvt.s32.f32 %v301
        %v303 = vld [vmem:[%s248] sm:$0xff]
        %v304 = vld [vmem:[%s248 + $0x8] sm:$0xff]
        %s305 = scalar_lea.vmem [#allocation5], 512
        %v306 = vld [vmem:[%s305] sm:$0xff]
        %v307 = vld [vmem:[%s305 + $0x8] sm:$0xff]
        %v308 = vld [vmem:[%s305 + $0x10] sm:$0xff]
        %v309 = vld [vmem:[%s305 + $0x18] sm:$0xff]
        %v310 = vld [vmem:[%s305 + $0x20] sm:$0xff]
        %v311 = vld [vmem:[%s305 + $0x28] sm:$0xff]
        %v312 = vld [vmem:[%s305 + $0x30] sm:$0xff]
        %v313 = vld [vmem:[%s305 + $0x38] sm:$0xff]
        %v314 = vld [vmem:[%s305 + $0x40] sm:$0xff]
        %v315 = vld [vmem:[%s305 + $0x48] sm:$0xff]
        %v316 = vld [vmem:[%s305 + $0x50] sm:$0xff]
        %v317 = vld [vmem:[%s305 + $0x58] sm:$0xff]
        %v318 = vld [vmem:[%s305 + $0x60] sm:$0xff]
        %v319 = vld [vmem:[%s305 + $0x68] sm:$0xff]
        %v320 = vld [vmem:[%s305 + $0x70] sm:$0xff]
        %v321 = vld [vmem:[%s305 + $0x78] sm:$0xff]
        %v322 = vld [vmem:[%s305 + $0x80] sm:$0xff]
        %v323 = vld [vmem:[%s305 + $0x88] sm:$0xff]
        %v324 = vld [vmem:[%s305 + $0x90] sm:$0xff]
        %v325 = vld [vmem:[%s305 + $0x98] sm:$0xff]
        %v326 = vld [vmem:[%s305 + $0xa0] sm:$0xff]
        %v327 = vld [vmem:[%s305 + $0xa8] sm:$0xff]
        %v328 = vld [vmem:[%s305 + $0xb0] sm:$0xff]
        %v329 = vld [vmem:[%s305 + $0xb8] sm:$0xff]
        %v330 = vld [vmem:[%s305 + $0xc0] sm:$0xff]
        %v331 = vld [vmem:[%s305 + $0xc8] sm:$0xff]
        %v332 = vld [vmem:[%s305 + $0xd0] sm:$0xff]
        %v333 = vld [vmem:[%s305 + $0xd8] sm:$0xff]
        %v334 = vld [vmem:[%s305 + $0xe0] sm:$0xff]
        %v335 = vld [vmem:[%s305 + $0xe8] sm:$0xff]
        %v336 = vld [vmem:[%s305 + $0xf0] sm:$0xff]
        %v337 = vld [vmem:[%s305 + $0xf8] sm:$0xff]
        %v338 = vld [vmem:[%s305 + $0x100] sm:$0xff]
        %v339 = vld [vmem:[%s305 + $0x108] sm:$0xff]
        %v340 = vld [vmem:[%s305 + $0x110] sm:$0xff]
        %v341 = vld [vmem:[%s305 + $0x118] sm:$0xff]
        %v342 = vld [vmem:[%s305 + $0x120] sm:$0xff]
        %v343 = vld [vmem:[%s305 + $0x128] sm:$0xff]
        %v344 = vld [vmem:[%s305 + $0x130] sm:$0xff]
        %v345 = vld [vmem:[%s305 + $0x138] sm:$0xff]
        %v346 = vld [vmem:[%s305 + $0x140] sm:$0xff]
        %v347 = vld [vmem:[%s305 + $0x148] sm:$0xff]
        %v348 = vld [vmem:[%s305 + $0x150] sm:$0xff]
        %v349 = vld [vmem:[%s305 + $0x158] sm:$0xff]
        %v350 = vld [vmem:[%s305 + $0x160] sm:$0xff]
        %v351 = vld [vmem:[%s305 + $0x168] sm:$0xff]
        %v352 = vld [vmem:[%s305 + $0x170] sm:$0xff]
        %v353 = vld [vmem:[%s305 + $0x178] sm:$0xff]
        %v354 = vld [vmem:[%s305 + $0x180] sm:$0xff]
        %v355 = vld [vmem:[%s305 + $0x188] sm:$0xff]
        %v356 = vld [vmem:[%s305 + $0x190] sm:$0xff]
        %v357 = vld [vmem:[%s305 + $0x198] sm:$0xff]
        %v358 = vld [vmem:[%s305 + $0x1a0] sm:$0xff]
        %v359 = vld [vmem:[%s305 + $0x1a8] sm:$0xff]
        %v360 = vld [vmem:[%s305 + $0x1b0] sm:$0xff]
        %v361 = vld [vmem:[%s305 + $0x1b8] sm:$0xff]
        %v362 = vld [vmem:[%s305 + $0x1c0] sm:$0xff]
        %v363 = vld [vmem:[%s305 + $0x1c8] sm:$0xff]
        %v364 = vld [vmem:[%s305 + $0x1d0] sm:$0xff]
        %v365 = vld [vmem:[%s305 + $0x1d8] sm:$0xff]
        %v366 = vld [vmem:[%s305 + $0x1e0] sm:$0xff]
        %v367 = vld [vmem:[%s305 + $0x1e8] sm:$0xff]
        %v368 = vld [vmem:[%s305 + $0x1f0] sm:$0xff]
        %v369 = vld [vmem:[%s305 + $0x1f8] sm:$0xff]
        %vm370 = vcmask 64512
        %v372 = vsel %vm370, %v298, 0
        %374 = vmatpush.msra.mxu0 0.0
        %375 = vmatpush.msra.mxu0 0.0
        %376 = vmatpush.msra.mxu0 0.0
        %377 = vmatpush.msra.mxu0 0.0
        %378 = vmatpush.msra.mxu0 0.0
        %379 = vmatpush.msra.mxu0 0.0
        %380 = vmatpush.msra.mxu0 0.0
        %381 = vmatpush.msra.mxu0 0.0
        %382 = vmatpush.msra.mxu0 0.0
        %383 = vmatpush.msra.mxu0 0.0
        %384 = vmatpush.msra.mxu0 0.0
        %385 = vmatpush.msra.mxu0 0.0
        %386 = vmatpush.msra.mxu0 0.0
        %387 = vmatpush.msra.mxu0 0.0
        %388 = vmatpush.msra.mxu0 0.0
        %389 = vmatpush.msra.mxu0 %v303
        %390 = vmatmul.f32.gmra.mxu0 %v372
        %v391 = vpop.f32.mrf.mxu0
        %v392 = vadd.f32 0.0, %v391
        %393 = vdwg.mxu0
        %394 = vmatpush.msra.mxu0 0.0
        %395 = vmatpush.msra.mxu0 0.0
        %396 = vmatpush.msra.mxu0 0.0
        %397 = vmatpush.msra.mxu0 0.0
        %398 = vmatpush.msra.mxu0 0.0
        %399 = vmatpush.msra.mxu0 0.0
        %400 = vmatpush.msra.mxu0 0.0
        %401 = vmatpush.msra.mxu0 0.0
        %402 = vmatpush.msra.mxu0 0.0
        %403 = vmatpush.msra.mxu0 0.0
        %404 = vmatpush.msra.mxu0 0.0
        %405 = vmatpush.msra.mxu0 0.0
        %406 = vmatpush.msra.mxu0 0.0
        %407 = vmatpush.msra.mxu0 0.0
        %408 = vmatpush.msra.mxu0 0.0
        %409 = vmatpush.msra.mxu0 %v304
        %410 = vmatmul.f32.gmra.mxu0 %v372
        %v411 = vpop.f32.mrf.mxu0
        %v412 = vadd.f32 0.0, %v411
        %413 = vdwg.mxu0
        %v414 = vld [vmem:[#allocation5] sm:$0xff]
        %v415 = vld [vmem:[#allocation5 + $0x8] sm:$0xff]
        %v416 = vld [vmem:[#allocation5 + $0x10] sm:$0xff]
        %v417 = vld [vmem:[#allocation5 + $0x18] sm:$0xff]
        %v418 = vld [vmem:[#allocation5 + $0x20] sm:$0xff]
        %v419 = vld [vmem:[#allocation5 + $0x28] sm:$0xff]
        %v420 = vld [vmem:[#allocation5 + $0x30] sm:$0xff]
        %v421 = vld [vmem:[#allocation5 + $0x38] sm:$0xff]
        %v422 = vld [vmem:[#allocation5 + $0x40] sm:$0xff]
        %v423 = vld [vmem:[#allocation5 + $0x48] sm:$0xff]
        %v424 = vld [vmem:[#allocation5 + $0x50] sm:$0xff]
        %v425 = vld [vmem:[#allocation5 + $0x58] sm:$0xff]
        %v426 = vld [vmem:[#allocation5 + $0x60] sm:$0xff]
        %v427 = vld [vmem:[#allocation5 + $0x68] sm:$0xff]
        %v428 = vld [vmem:[#allocation5 + $0x70] sm:$0xff]
        %v429 = vld [vmem:[#allocation5 + $0x78] sm:$0xff]
        %v430 = vld [vmem:[#allocation5 + $0x80] sm:$0xff]
        %v431 = vld [vmem:[#allocation5 + $0x88] sm:$0xff]
        %v432 = vld [vmem:[#allocation5 + $0x90] sm:$0xff]
        %v433 = vld [vmem:[#allocation5 + $0x98] sm:$0xff]
        %v434 = vld [vmem:[#allocation5 + $0xa0] sm:$0xff]
        %v435 = vld [vmem:[#allocation5 + $0xa8] sm:$0xff]
        %v436 = vld [vmem:[#allocation5 + $0xb0] sm:$0xff]
        %v437 = vld [vmem:[#allocation5 + $0xb8] sm:$0xff]
        %v438 = vld [vmem:[#allocation5 + $0xc0] sm:$0xff]
        %v439 = vld [vmem:[#allocation5 + $0xc8] sm:$0xff]
        %v440 = vld [vmem:[#allocation5 + $0xd0] sm:$0xff]
        %v441 = vld [vmem:[#allocation5 + $0xd8] sm:$0xff]
        %v442 = vld [vmem:[#allocation5 + $0xe0] sm:$0xff]
        %v443 = vld [vmem:[#allocation5 + $0xe8] sm:$0xff]
        %v444 = vld [vmem:[#allocation5 + $0xf0] sm:$0xff]
        %v445 = vld [vmem:[#allocation5 + $0xf8] sm:$0xff]
        %v446 = vld [vmem:[#allocation5 + $0x100] sm:$0xff]
        %v447 = vld [vmem:[#allocation5 + $0x108] sm:$0xff]
        %v448 = vld [vmem:[#allocation5 + $0x110] sm:$0xff]
        %v449 = vld [vmem:[#allocation5 + $0x118] sm:$0xff]
        %v450 = vld [vmem:[#allocation5 + $0x120] sm:$0xff]
        %v451 = vld [vmem:[#allocation5 + $0x128] sm:$0xff]
        %v452 = vld [vmem:[#allocation5 + $0x130] sm:$0xff]
        %v453 = vld [vmem:[#allocation5 + $0x138] sm:$0xff]
        %v454 = vld [vmem:[#allocation5 + $0x140] sm:$0xff]
        %v455 = vld [vmem:[#allocation5 + $0x148] sm:$0xff]
        %v456 = vld [vmem:[#allocation5 + $0x150] sm:$0xff]
        %v457 = vld [vmem:[#allocation5 + $0x158] sm:$0xff]
        %v458 = vld [vmem:[#allocation5 + $0x160] sm:$0xff]
        %v459 = vld [vmem:[#allocation5 + $0x168] sm:$0xff]
        %v460 = vld [vmem:[#allocation5 + $0x170] sm:$0xff]
        %v461 = vld [vmem:[#allocation5 + $0x178] sm:$0xff]
        %v462 = vld [vmem:[#allocation5 + $0x180] sm:$0xff]
        %v463 = vld [vmem:[#allocation5 + $0x188] sm:$0xff]
        %v464 = vld [vmem:[#allocation5 + $0x190] sm:$0xff]
        %v465 = vld [vmem:[#allocation5 + $0x198] sm:$0xff]
        %v466 = vld [vmem:[#allocation5 + $0x1a0] sm:$0xff]
        %v467 = vld [vmem:[#allocation5 + $0x1a8] sm:$0xff]
        %v468 = vld [vmem:[#allocation5 + $0x1b0] sm:$0xff]
        %v469 = vld [vmem:[#allocation5 + $0x1b8] sm:$0xff]
        %v470 = vld [vmem:[#allocation5 + $0x1c0] sm:$0xff]
        %v471 = vld [vmem:[#allocation5 + $0x1c8] sm:$0xff]
        %v472 = vld [vmem:[#allocation5 + $0x1d0] sm:$0xff]
        %v473 = vld [vmem:[#allocation5 + $0x1d8] sm:$0xff]
        %v474 = vld [vmem:[#allocation5 + $0x1e0] sm:$0xff]
        %v475 = vld [vmem:[#allocation5 + $0x1e8] sm:$0xff]
        %v476 = vld [vmem:[#allocation5 + $0x1f0] sm:$0xff]
        %v477 = vld [vmem:[#allocation5 + $0x1f8] sm:$0xff]
        %478 = vmatpush.msra.mxu0 %v444
        %479 = vmatpush.msra.mxu0 %v442
        %480 = vmatpush.msra.mxu0 %v440
        %481 = vmatpush.msra.mxu0 %v438
        %482 = vmatpush.msra.mxu0 %v436
        %483 = vmatpush.msra.mxu0 %v434
        %484 = vmatpush.msra.mxu0 %v432
        %485 = vmatpush.msra.mxu0 %v430
        %486 = vmatpush.msra.mxu0 %v428
        %487 = vmatpush.msra.mxu0 %v426
        %488 = vmatpush.msra.mxu0 %v424
        %489 = vmatpush.msra.mxu0 %v422
        %490 = vmatpush.msra.mxu0 %v420
        %491 = vmatpush.msra.mxu0 %v418
        %492 = vmatpush.msra.mxu0 %v416
        %493 = vmatpush.msra.mxu0 %v414
        %494 = vmatmul.f32.gmra.mxu0 %v392
        %v495 = vpop.f32.mrf.mxu0
        %v496 = vadd.f32 0.0, %v495
        %497 = vdwg.mxu0
        %498 = vmatpush.msra.mxu0 %v476
        %499 = vmatpush.msra.mxu0 %v474
        %500 = vmatpush.msra.mxu0 %v472
        %501 = vmatpush.msra.mxu0 %v470
        %502 = vmatpush.msra.mxu0 %v468
        %503 = vmatpush.msra.mxu0 %v466
        %504 = vmatpush.msra.mxu0 %v464
        %505 = vmatpush.msra.mxu0 %v462
        %506 = vmatpush.msra.mxu0 %v460
        %507 = vmatpush.msra.mxu0 %v458
        %508 = vmatpush.msra.mxu0 %v456
        %509 = vmatpush.msra.mxu0 %v454
        %510 = vmatpush.msra.mxu0 %v452
        %511 = vmatpush.msra.mxu0 %v450
        %512 = vmatpush.msra.mxu0 %v448
        %513 = vmatpush.msra.mxu0 %v446
        %514 = vmatmul.f32.gmra.mxu0 %v412
        %v515 = vpop.f32.mrf.mxu0
        %v516 = vadd.f32 %v496, %v515
        %517 = vdwg.mxu0
        %518 = vmatpush.msra.mxu0 %v445
        %519 = vmatpush.msra.mxu0 %v443
        %520 = vmatpush.msra.mxu0 %v441
        %521 = vmatpush.msra.mxu0 %v439
        %522 = vmatpush.msra.mxu0 %v437
        %523 = vmatpush.msra.mxu0 %v435
        %524 = vmatpush.msra.mxu0 %v433
        %525 = vmatpush.msra.mxu0 %v431
        %526 = vmatpush.msra.mxu0 %v429
        %527 = vmatpush.msra.mxu0 %v427
        %528 = vmatpush.msra.mxu0 %v425
        %529 = vmatpush.msra.mxu0 %v423
        %530 = vmatpush.msra.mxu0 %v421
        %531 = vmatpush.msra.mxu0 %v419
        %532 = vmatpush.msra.mxu0 %v417
        %533 = vmatpush.msra.mxu0 %v415
        %534 = vmatmul.f32.gmra.mxu0 %v392
        %v535 = vpop.f32.mrf.mxu0
        %v536 = vadd.f32 0.0, %v535
        %537 = vdwg.mxu0
        %538 = vmatpush.msra.mxu0 %v477
        %539 = vmatpush.msra.mxu0 %v475
        %540 = vmatpush.msra.mxu0 %v473
        %541 = vmatpush.msra.mxu0 %v471
        %542 = vmatpush.msra.mxu0 %v469
        %543 = vmatpush.msra.mxu0 %v467
        %544 = vmatpush.msra.mxu0 %v465
        %545 = vmatpush.msra.mxu0 %v463
        %546 = vmatpush.msra.mxu0 %v461
        %547 = vmatpush.msra.mxu0 %v459
        %548 = vmatpush.msra.mxu0 %v457
        %549 = vmatpush.msra.mxu0 %v455
        %550 = vmatpush.msra.mxu0 %v453
        %551 = vmatpush.msra.mxu0 %v451
        %552 = vmatpush.msra.mxu0 %v449
        %553 = vmatpush.msra.mxu0 %v447
        %554 = vmatmul.f32.gmra.mxu0 %v412
        %v555 = vpop.f32.mrf.mxu0
        %v556 = vadd.f32 %v536, %v555
        %557 = vdwg.mxu0
        %558 = vmatpush.msra.mxu0 %v336
        %559 = vmatpush.msra.mxu0 %v334
        %560 = vmatpush.msra.mxu0 %v332
        %561 = vmatpush.msra.mxu0 %v330
        %562 = vmatpush.msra.mxu0 %v328
        %563 = vmatpush.msra.mxu0 %v326
        %564 = vmatpush.msra.mxu0 %v324
        %565 = vmatpush.msra.mxu0 %v322
        %566 = vmatpush.msra.mxu0 %v320
        %567 = vmatpush.msra.mxu0 %v318
        %568 = vmatpush.msra.mxu0 %v316
        %569 = vmatpush.msra.mxu0 %v314
        %570 = vmatpush.msra.mxu0 %v312
        %571 = vmatpush.msra.mxu0 %v310
        %572 = vmatpush.msra.mxu0 %v308
        %573 = vmatpush.msra.mxu0 %v306
        %574 = vmatmul.f32.gmra.mxu0 %v303
        %v575 = vpop.f32.mrf.mxu0
        %v576 = vadd.f32 %v516, %v575
        %577 = vdwg.mxu0
        %578 = vmatpush.msra.mxu0 %v368
        %579 = vmatpush.msra.mxu0 %v366
        %580 = vmatpush.msra.mxu0 %v364
        %581 = vmatpush.msra.mxu0 %v362
        %582 = vmatpush.msra.mxu0 %v360
        %583 = vmatpush.msra.mxu0 %v358
        %584 = vmatpush.msra.mxu0 %v356
        %585 = vmatpush.msra.mxu0 %v354
        %586 = vmatpush.msra.mxu0 %v352
        %587 = vmatpush.msra.mxu0 %v350
        %588 = vmatpush.msra.mxu0 %v348
        %589 = vmatpush.msra.mxu0 %v346
        %590 = vmatpush.msra.mxu0 %v344
        %591 = vmatpush.msra.mxu0 %v342
        %592 = vmatpush.msra.mxu0 %v340
        %593 = vmatpush.msra.mxu0 %v338
        %594 = vmatmul.f32.gmra.mxu0 %v304
        %v595 = vpop.f32.mrf.mxu0
        %v596 = vadd.f32 %v576, %v595
        %597 = vdwg.mxu0
        %598 = vmatpush.msra.mxu0 %v337
        %599 = vmatpush.msra.mxu0 %v335
        %600 = vmatpush.msra.mxu0 %v333
        %601 = vmatpush.msra.mxu0 %v331
        %602 = vmatpush.msra.mxu0 %v329
        %603 = vmatpush.msra.mxu0 %v327
        %604 = vmatpush.msra.mxu0 %v325
        %605 = vmatpush.msra.mxu0 %v323
        %606 = vmatpush.msra.mxu0 %v321
        %607 = vmatpush.msra.mxu0 %v319
        %608 = vmatpush.msra.mxu0 %v317
        %609 = vmatpush.msra.mxu0 %v315
        %610 = vmatpush.msra.mxu0 %v313
        %611 = vmatpush.msra.mxu0 %v311
        %612 = vmatpush.msra.mxu0 %v309
        %613 = vmatpush.msra.mxu0 %v307
        %614 = vmatmul.f32.gmra.mxu0 %v303
        %v615 = vpop.f32.mrf.mxu0
        %v616 = vadd.f32 %v556, %v615
        %617 = vdwg.mxu0
        %618 = vmatpush.msra.mxu0 %v369
        %619 = vmatpush.msra.mxu0 %v367
        %620 = vmatpush.msra.mxu0 %v365
        %621 = vmatpush.msra.mxu0 %v363
        %622 = vmatpush.msra.mxu0 %v361
        %623 = vmatpush.msra.mxu0 %v359
        %624 = vmatpush.msra.mxu0 %v357
        %625 = vmatpush.msra.mxu0 %v355
        %626 = vmatpush.msra.mxu0 %v353
        %627 = vmatpush.msra.mxu0 %v351
        %628 = vmatpush.msra.mxu0 %v349
        %629 = vmatpush.msra.mxu0 %v347
        %630 = vmatpush.msra.mxu0 %v345
        %631 = vmatpush.msra.mxu0 %v343
        %632 = vmatpush.msra.mxu0 %v341
        %633 = vmatpush.msra.mxu0 %v339
        %634 = vmatmul.f32.gmra.mxu0 %v304
        %v635 = vpop.f32.mrf.mxu0
        %v636 = vadd.f32 %v616, %v635
        %637 = vdwg.mxu0
        %v639 = vsel %vm370, %v302, 0
        %641 = vmatpush.msra.mxu0 0.0
        %642 = vmatpush.msra.mxu0 0.0
        %643 = vmatpush.msra.mxu0 0.0
        %644 = vmatpush.msra.mxu0 0.0
        %645 = vmatpush.msra.mxu0 0.0
        %646 = vmatpush.msra.mxu0 0.0
        %647 = vmatpush.msra.mxu0 0.0
        %648 = vmatpush.msra.mxu0 0.0
        %649 = vmatpush.msra.mxu0 0.0
        %650 = vmatpush.msra.mxu0 0.0
        %651 = vmatpush.msra.mxu0 0.0
        %652 = vmatpush.msra.mxu0 0.0
        %653 = vmatpush.msra.mxu0 0.0
        %654 = vmatpush.msra.mxu0 0.0
        %655 = vmatpush.msra.mxu0 0.0
        %656 = vmatpush.msra.mxu0 %v303
        %657 = vmatmul.f32.gmra.mxu0 %v639
        %v658 = vpop.f32.mrf.mxu0
        %v659 = vadd.f32 0.0, %v658
        %660 = vdwg.mxu0
        %661 = vmatpush.msra.mxu0 0.0
        %662 = vmatpush.msra.mxu0 0.0
        %663 = vmatpush.msra.mxu0 0.0
        %664 = vmatpush.msra.mxu0 0.0
        %665 = vmatpush.msra.mxu0 0.0
        %666 = vmatpush.msra.mxu0 0.0
        %667 = vmatpush.msra.mxu0 0.0
        %668 = vmatpush.msra.mxu0 0.0
        %669 = vmatpush.msra.mxu0 0.0
        %670 = vmatpush.msra.mxu0 0.0
        %671 = vmatpush.msra.mxu0 0.0
        %672 = vmatpush.msra.mxu0 0.0
        %673 = vmatpush.msra.mxu0 0.0
        %674 = vmatpush.msra.mxu0 0.0
        %675 = vmatpush.msra.mxu0 0.0
        %676 = vmatpush.msra.mxu0 %v304
        %677 = vmatmul.f32.gmra.mxu0 %v639
        %v678 = vpop.f32.mrf.mxu0
        %v679 = vadd.f32 0.0, %v678
        %680 = vdwg.mxu0
        %s681 = scalar_lea.vmem [#allocation5], 1024
        %v682 = vld [vmem:[%s681] sm:$0xff]
        %v683 = vld [vmem:[%s681 + $0x8] sm:$0xff]
        %v684 = vld [vmem:[%s681 + $0x10] sm:$0xff]
        %v685 = vld [vmem:[%s681 + $0x18] sm:$0xff]
        %v686 = vld [vmem:[%s681 + $0x20] sm:$0xff]
        %v687 = vld [vmem:[%s681 + $0x28] sm:$0xff]
        %v688 = vld [vmem:[%s681 + $0x30] sm:$0xff]
        %v689 = vld [vmem:[%s681 + $0x38] sm:$0xff]
        %v690 = vld [vmem:[%s681 + $0x40] sm:$0xff]
        %v691 = vld [vmem:[%s681 + $0x48] sm:$0xff]
        %v692 = vld [vmem:[%s681 + $0x50] sm:$0xff]
        %v693 = vld [vmem:[%s681 + $0x58] sm:$0xff]
        %v694 = vld [vmem:[%s681 + $0x60] sm:$0xff]
        %v695 = vld [vmem:[%s681 + $0x68] sm:$0xff]
        %v696 = vld [vmem:[%s681 + $0x70] sm:$0xff]
        %v697 = vld [vmem:[%s681 + $0x78] sm:$0xff]
        %v698 = vld [vmem:[%s681 + $0x80] sm:$0xff]
        %v699 = vld [vmem:[%s681 + $0x88] sm:$0xff]
        %v700 = vld [vmem:[%s681 + $0x90] sm:$0xff]
        %v701 = vld [vmem:[%s681 + $0x98] sm:$0xff]
        %v702 = vld [vmem:[%s681 + $0xa0] sm:$0xff]
        %v703 = vld [vmem:[%s681 + $0xa8] sm:$0xff]
        %v704 = vld [vmem:[%s681 + $0xb0] sm:$0xff]
        %v705 = vld [vmem:[%s681 + $0xb8] sm:$0xff]
        %v706 = vld [vmem:[%s681 + $0xc0] sm:$0xff]
        %v707 = vld [vmem:[%s681 + $0xc8] sm:$0xff]
        %v708 = vld [vmem:[%s681 + $0xd0] sm:$0xff]
        %v709 = vld [vmem:[%s681 + $0xd8] sm:$0xff]
        %v710 = vld [vmem:[%s681 + $0xe0] sm:$0xff]
        %v711 = vld [vmem:[%s681 + $0xe8] sm:$0xff]
        %v712 = vld [vmem:[%s681 + $0xf0] sm:$0xff]
        %v713 = vld [vmem:[%s681 + $0xf8] sm:$0xff]
        %v714 = vld [vmem:[%s681 + $0x100] sm:$0xff]
        %v715 = vld [vmem:[%s681 + $0x108] sm:$0xff]
        %v716 = vld [vmem:[%s681 + $0x110] sm:$0xff]
        %v717 = vld [vmem:[%s681 + $0x118] sm:$0xff]
        %v718 = vld [vmem:[%s681 + $0x120] sm:$0xff]
        %v719 = vld [vmem:[%s681 + $0x128] sm:$0xff]
        %v720 = vld [vmem:[%s681 + $0x130] sm:$0xff]
        %v721 = vld [vmem:[%s681 + $0x138] sm:$0xff]
        %v722 = vld [vmem:[%s681 + $0x140] sm:$0xff]
        %v723 = vld [vmem:[%s681 + $0x148] sm:$0xff]
        %v724 = vld [vmem:[%s681 + $0x150] sm:$0xff]
        %v725 = vld [vmem:[%s681 + $0x158] sm:$0xff]
        %v726 = vld [vmem:[%s681 + $0x160] sm:$0xff]
        %v727 = vld [vmem:[%s681 + $0x168] sm:$0xff]
        %v728 = vld [vmem:[%s681 + $0x170] sm:$0xff]
        %v729 = vld [vmem:[%s681 + $0x178] sm:$0xff]
        %v730 = vld [vmem:[%s681 + $0x180] sm:$0xff]
        %v731 = vld [vmem:[%s681 + $0x188] sm:$0xff]
        %v732 = vld [vmem:[%s681 + $0x190] sm:$0xff]
        %v733 = vld [vmem:[%s681 + $0x198] sm:$0xff]
        %v734 = vld [vmem:[%s681 + $0x1a0] sm:$0xff]
        %v735 = vld [vmem:[%s681 + $0x1a8] sm:$0xff]
        %v736 = vld [vmem:[%s681 + $0x1b0] sm:$0xff]
        %v737 = vld [vmem:[%s681 + $0x1b8] sm:$0xff]
        %v738 = vld [vmem:[%s681 + $0x1c0] sm:$0xff]
        %v739 = vld [vmem:[%s681 + $0x1c8] sm:$0xff]
        %v740 = vld [vmem:[%s681 + $0x1d0] sm:$0xff]
        %v741 = vld [vmem:[%s681 + $0x1d8] sm:$0xff]
        %v742 = vld [vmem:[%s681 + $0x1e0] sm:$0xff]
        %v743 = vld [vmem:[%s681 + $0x1e8] sm:$0xff]
        %v744 = vld [vmem:[%s681 + $0x1f0] sm:$0xff]
        %v745 = vld [vmem:[%s681 + $0x1f8] sm:$0xff]
        %746 = vmatpush.msra.mxu0 %v712
        %747 = vmatpush.msra.mxu0 %v710
        %748 = vmatpush.msra.mxu0 %v708
        %749 = vmatpush.msra.mxu0 %v706
        %750 = vmatpush.msra.mxu0 %v704
        %751 = vmatpush.msra.mxu0 %v702
        %752 = vmatpush.msra.mxu0 %v700
        %753 = vmatpush.msra.mxu0 %v698
        %754 = vmatpush.msra.mxu0 %v696
        %755 = vmatpush.msra.mxu0 %v694
        %756 = vmatpush.msra.mxu0 %v692
        %757 = vmatpush.msra.mxu0 %v690
        %758 = vmatpush.msra.mxu0 %v688
        %759 = vmatpush.msra.mxu0 %v686
        %760 = vmatpush.msra.mxu0 %v684
        %761 = vmatpush.msra.mxu0 %v682
        %762 = vmatmul.f32.gmra.mxu0 %v659
        %v763 = vpop.f32.mrf.mxu0
        %v764 = vadd.f32 0.0, %v763
        %765 = vdwg.mxu0
        %766 = vmatpush.msra.mxu0 %v744
        %767 = vmatpush.msra.mxu0 %v742
        %768 = vmatpush.msra.mxu0 %v740
        %769 = vmatpush.msra.mxu0 %v738
        %770 = vmatpush.msra.mxu0 %v736
        %771 = vmatpush.msra.mxu0 %v734
        %772 = vmatpush.msra.mxu0 %v732
        %773 = vmatpush.msra.mxu0 %v730
        %774 = vmatpush.msra.mxu0 %v728
        %775 = vmatpush.msra.mxu0 %v726
        %776 = vmatpush.msra.mxu0 %v724
        %777 = vmatpush.msra.mxu0 %v722
        %778 = vmatpush.msra.mxu0 %v720
        %779 = vmatpush.msra.mxu0 %v718
        %780 = vmatpush.msra.mxu0 %v716
        %781 = vmatpush.msra.mxu0 %v714
        %782 = vmatmul.f32.gmra.mxu0 %v679
        %v783 = vpop.f32.mrf.mxu0
        %v784 = vadd.f32 %v764, %v783
        %785 = vdwg.mxu0
        %786 = vmatpush.msra.mxu0 %v713
        %787 = vmatpush.msra.mxu0 %v711
        %788 = vmatpush.msra.mxu0 %v709
        %789 = vmatpush.msra.mxu0 %v707
        %790 = vmatpush.msra.mxu0 %v705
        %791 = vmatpush.msra.mxu0 %v703
        %792 = vmatpush.msra.mxu0 %v701
        %793 = vmatpush.msra.mxu0 %v699
        %794 = vmatpush.msra.mxu0 %v697
        %795 = vmatpush.msra.mxu0 %v695
        %796 = vmatpush.msra.mxu0 %v693
        %797 = vmatpush.msra.mxu0 %v691
        %798 = vmatpush.msra.mxu0 %v689
        %799 = vmatpush.msra.mxu0 %v687
        %800 = vmatpush.msra.mxu0 %v685
        %801 = vmatpush.msra.mxu0 %v683
        %802 = vmatmul.f32.gmra.mxu0 %v659
        %v803 = vpop.f32.mrf.mxu0
        %v804 = vadd.f32 0.0, %v803
        %805 = vdwg.mxu0
        %806 = vmatpush.msra.mxu0 %v745
        %807 = vmatpush.msra.mxu0 %v743
        %808 = vmatpush.msra.mxu0 %v741
        %809 = vmatpush.msra.mxu0 %v739
        %810 = vmatpush.msra.mxu0 %v737
        %811 = vmatpush.msra.mxu0 %v735
        %812 = vmatpush.msra.mxu0 %v733
        %813 = vmatpush.msra.mxu0 %v731
        %814 = vmatpush.msra.mxu0 %v729
        %815 = vmatpush.msra.mxu0 %v727
        %816 = vmatpush.msra.mxu0 %v725
        %817 = vmatpush.msra.mxu0 %v723
        %818 = vmatpush.msra.mxu0 %v721
        %819 = vmatpush.msra.mxu0 %v719
        %820 = vmatpush.msra.mxu0 %v717
        %821 = vmatpush.msra.mxu0 %v715
        %822 = vmatmul.f32.gmra.mxu0 %v679
        %v823 = vpop.f32.mrf.mxu0
        %v824 = vadd.f32 %v804, %v823
        %825 = vdwg.mxu0
        %v826 = vadd.f32 %v596, %v784
        %v827 = vadd.f32 %v636, %v824
        %v828 = vld [vmem:[#allocation7] sm:$0x3]
        %v830 = vperm.slane %v828, 0
        %v831 = vperm.slane %v828, 1
        %v834 = vadd.f32 %v826, %v830
        %v835 = vadd.f32 %v827, %v831
        %v836 = vmax.f32 %v834, 0.0
        %v837 = vmax.f32 %v835, 0.0
        %s838 = scalar_lea.vmem [#allocation8], 512
        %v839 = vld [vmem:[%s838] sm:$0xff]
        %v840 = vld [vmem:[%s838 + $0x8] sm:$0xff]
        %v841 = vld [vmem:[%s838 + $0x10] sm:$0xff]
        %v842 = vld [vmem:[%s838 + $0x18] sm:$0xff]
        %v843 = vld [vmem:[%s838 + $0x20] sm:$0xff]
        %v844 = vld [vmem:[%s838 + $0x28] sm:$0xff]
        %v845 = vld [vmem:[%s838 + $0x30] sm:$0xff]
        %v846 = vld [vmem:[%s838 + $0x38] sm:$0xff]
        %v847 = vld [vmem:[%s838 + $0x40] sm:$0xff]
        %v848 = vld [vmem:[%s838 + $0x48] sm:$0xff]
        %v849 = vld [vmem:[%s838 + $0x50] sm:$0xff]
        %v850 = vld [vmem:[%s838 + $0x58] sm:$0xff]
        %v851 = vld [vmem:[%s838 + $0x60] sm:$0xff]
        %v852 = vld [vmem:[%s838 + $0x68] sm:$0xff]
        %v853 = vld [vmem:[%s838 + $0x70] sm:$0xff]
        %v854 = vld [vmem:[%s838 + $0x78] sm:$0xff]
        %v855 = vld [vmem:[%s838 + $0x80] sm:$0xff]
        %v856 = vld [vmem:[%s838 + $0x88] sm:$0xff]
        %v857 = vld [vmem:[%s838 + $0x90] sm:$0xff]
        %v858 = vld [vmem:[%s838 + $0x98] sm:$0xff]
        %v859 = vld [vmem:[%s838 + $0xa0] sm:$0xff]
        %v860 = vld [vmem:[%s838 + $0xa8] sm:$0xff]
        %v861 = vld [vmem:[%s838 + $0xb0] sm:$0xff]
        %v862 = vld [vmem:[%s838 + $0xb8] sm:$0xff]
        %v863 = vld [vmem:[%s838 + $0xc0] sm:$0xff]
        %v864 = vld [vmem:[%s838 + $0xc8] sm:$0xff]
        %v865 = vld [vmem:[%s838 + $0xd0] sm:$0xff]
        %v866 = vld [vmem:[%s838 + $0xd8] sm:$0xff]
        %v867 = vld [vmem:[%s838 + $0xe0] sm:$0xff]
        %v868 = vld [vmem:[%s838 + $0xe8] sm:$0xff]
        %v869 = vld [vmem:[%s838 + $0xf0] sm:$0xff]
        %v870 = vld [vmem:[%s838 + $0xf8] sm:$0xff]
        %v871 = vld [vmem:[%s838 + $0x100] sm:$0xff]
        %v872 = vld [vmem:[%s838 + $0x108] sm:$0xff]
        %v873 = vld [vmem:[%s838 + $0x110] sm:$0xff]
        %v874 = vld [vmem:[%s838 + $0x118] sm:$0xff]
        %v875 = vld [vmem:[%s838 + $0x120] sm:$0xff]
        %v876 = vld [vmem:[%s838 + $0x128] sm:$0xff]
        %v877 = vld [vmem:[%s838 + $0x130] sm:$0xff]
        %v878 = vld [vmem:[%s838 + $0x138] sm:$0xff]
        %v879 = vld [vmem:[%s838 + $0x140] sm:$0xff]
        %v880 = vld [vmem:[%s838 + $0x148] sm:$0xff]
        %v881 = vld [vmem:[%s838 + $0x150] sm:$0xff]
        %v882 = vld [vmem:[%s838 + $0x158] sm:$0xff]
        %v883 = vld [vmem:[%s838 + $0x160] sm:$0xff]
        %v884 = vld [vmem:[%s838 + $0x168] sm:$0xff]
        %v885 = vld [vmem:[%s838 + $0x170] sm:$0xff]
        %v886 = vld [vmem:[%s838 + $0x178] sm:$0xff]
        %v887 = vld [vmem:[%s838 + $0x180] sm:$0xff]
        %v888 = vld [vmem:[%s838 + $0x188] sm:$0xff]
        %v889 = vld [vmem:[%s838 + $0x190] sm:$0xff]
        %v890 = vld [vmem:[%s838 + $0x198] sm:$0xff]
        %v891 = vld [vmem:[%s838 + $0x1a0] sm:$0xff]
        %v892 = vld [vmem:[%s838 + $0x1a8] sm:$0xff]
        %v893 = vld [vmem:[%s838 + $0x1b0] sm:$0xff]
        %v894 = vld [vmem:[%s838 + $0x1b8] sm:$0xff]
        %v895 = vld [vmem:[%s838 + $0x1c0] sm:$0xff]
        %v896 = vld [vmem:[%s838 + $0x1c8] sm:$0xff]
        %v897 = vld [vmem:[%s838 + $0x1d0] sm:$0xff]
        %v898 = vld [vmem:[%s838 + $0x1d8] sm:$0xff]
        %v899 = vld [vmem:[%s838 + $0x1e0] sm:$0xff]
        %v900 = vld [vmem:[%s838 + $0x1e8] sm:$0xff]
        %v901 = vld [vmem:[%s838 + $0x1f0] sm:$0xff]
        %v902 = vld [vmem:[%s838 + $0x1f8] sm:$0xff]
        %903 = vmatpush.msra.mxu0 0.0
        %904 = vmatpush.msra.mxu0 0.0
        %905 = vmatpush.msra.mxu0 0.0
        %906 = vmatpush.msra.mxu0 0.0
        %907 = vmatpush.msra.mxu0 0.0
        %908 = vmatpush.msra.mxu0 0.0
        %909 = vmatpush.msra.mxu0 0.0
        %910 = vmatpush.msra.mxu0 0.0
        %911 = vmatpush.msra.mxu0 0.0
        %912 = vmatpush.msra.mxu0 0.0
        %913 = vmatpush.msra.mxu0 0.0
        %914 = vmatpush.msra.mxu0 0.0
        %915 = vmatpush.msra.mxu0 0.0
        %916 = vmatpush.msra.mxu0 0.0
        %917 = vmatpush.msra.mxu0 0.0
        %918 = vmatpush.msra.mxu0 %v836
        %919 = vmatmul.f32.gmra.mxu0 %v372
        %v920 = vpop.f32.mrf.mxu0
        %v921 = vadd.f32 0.0, %v920
        %922 = vdwg.mxu0
        %923 = vmatpush.msra.mxu0 0.0
        %924 = vmatpush.msra.mxu0 0.0
        %925 = vmatpush.msra.mxu0 0.0
        %926 = vmatpush.msra.mxu0 0.0
        %927 = vmatpush.msra.mxu0 0.0
        %928 = vmatpush.msra.mxu0 0.0
        %929 = vmatpush.msra.mxu0 0.0
        %930 = vmatpush.msra.mxu0 0.0
        %931 = vmatpush.msra.mxu0 0.0
        %932 = vmatpush.msra.mxu0 0.0
        %933 = vmatpush.msra.mxu0 0.0
        %934 = vmatpush.msra.mxu0 0.0
        %935 = vmatpush.msra.mxu0 0.0
        %936 = vmatpush.msra.mxu0 0.0
        %937 = vmatpush.msra.mxu0 0.0
        %938 = vmatpush.msra.mxu0 %v837
        %939 = vmatmul.f32.gmra.mxu0 %v372
        %v940 = vpop.f32.mrf.mxu0
        %v941 = vadd.f32 0.0, %v940
        %942 = vdwg.mxu0
        %v943 = vld [vmem:[#allocation8] sm:$0xff]
        %v944 = vld [vmem:[#allocation8 + $0x8] sm:$0xff]
        %v945 = vld [vmem:[#allocation8 + $0x10] sm:$0xff]
        %v946 = vld [vmem:[#allocation8 + $0x18] sm:$0xff]
        %v947 = vld [vmem:[#allocation8 + $0x20] sm:$0xff]
        %v948 = vld [vmem:[#allocation8 + $0x28] sm:$0xff]
        %v949 = vld [vmem:[#allocation8 + $0x30] sm:$0xff]
        %v950 = vld [vmem:[#allocation8 + $0x38] sm:$0xff]
        %v951 = vld [vmem:[#allocation8 + $0x40] sm:$0xff]
        %v952 = vld [vmem:[#allocation8 + $0x48] sm:$0xff]
        %v953 = vld [vmem:[#allocation8 + $0x50] sm:$0xff]
        %v954 = vld [vmem:[#allocation8 + $0x58] sm:$0xff]
        %v955 = vld [vmem:[#allocation8 + $0x60] sm:$0xff]
        %v956 = vld [vmem:[#allocation8 + $0x68] sm:$0xff]
        %v957 = vld [vmem:[#allocation8 + $0x70] sm:$0xff]
        %v958 = vld [vmem:[#allocation8 + $0x78] sm:$0xff]
        %v959 = vld [vmem:[#allocation8 + $0x80] sm:$0xff]
        %v960 = vld [vmem:[#allocation8 + $0x88] sm:$0xff]
        %v961 = vld [vmem:[#allocation8 + $0x90] sm:$0xff]
        %v962 = vld [vmem:[#allocation8 + $0x98] sm:$0xff]
        %v963 = vld [vmem:[#allocation8 + $0xa0] sm:$0xff]
        %v964 = vld [vmem:[#allocation8 + $0xa8] sm:$0xff]
        %v965 = vld [vmem:[#allocation8 + $0xb0] sm:$0xff]
        %v966 = vld [vmem:[#allocation8 + $0xb8] sm:$0xff]
        %v967 = vld [vmem:[#allocation8 + $0xc0] sm:$0xff]
        %v968 = vld [vmem:[#allocation8 + $0xc8] sm:$0xff]
        %v969 = vld [vmem:[#allocation8 + $0xd0] sm:$0xff]
        %v970 = vld [vmem:[#allocation8 + $0xd8] sm:$0xff]
        %v971 = vld [vmem:[#allocation8 + $0xe0] sm:$0xff]
        %v972 = vld [vmem:[#allocation8 + $0xe8] sm:$0xff]
        %v973 = vld [vmem:[#allocation8 + $0xf0] sm:$0xff]
        %v974 = vld [vmem:[#allocation8 + $0xf8] sm:$0xff]
        %v975 = vld [vmem:[#allocation8 + $0x100] sm:$0xff]
        %v976 = vld [vmem:[#allocation8 + $0x108] sm:$0xff]
        %v977 = vld [vmem:[#allocation8 + $0x110] sm:$0xff]
        %v978 = vld [vmem:[#allocation8 + $0x118] sm:$0xff]
        %v979 = vld [vmem:[#allocation8 + $0x120] sm:$0xff]
        %v980 = vld [vmem:[#allocation8 + $0x128] sm:$0xff]
        %v981 = vld [vmem:[#allocation8 + $0x130] sm:$0xff]
        %v982 = vld [vmem:[#allocation8 + $0x138] sm:$0xff]
        %v983 = vld [vmem:[#allocation8 + $0x140] sm:$0xff]
        %v984 = vld [vmem:[#allocation8 + $0x148] sm:$0xff]
        %v985 = vld [vmem:[#allocation8 + $0x150] sm:$0xff]
        %v986 = vld [vmem:[#allocation8 + $0x158] sm:$0xff]
        %v987 = vld [vmem:[#allocation8 + $0x160] sm:$0xff]
        %v988 = vld [vmem:[#allocation8 + $0x168] sm:$0xff]
        %v989 = vld [vmem:[#allocation8 + $0x170] sm:$0xff]
        %v990 = vld [vmem:[#allocation8 + $0x178] sm:$0xff]
        %v991 = vld [vmem:[#allocation8 + $0x180] sm:$0xff]
        %v992 = vld [vmem:[#allocation8 + $0x188] sm:$0xff]
        %v993 = vld [vmem:[#allocation8 + $0x190] sm:$0xff]
        %v994 = vld [vmem:[#allocation8 + $0x198] sm:$0xff]
        %v995 = vld [vmem:[#allocation8 + $0x1a0] sm:$0xff]
        %v996 = vld [vmem:[#allocation8 + $0x1a8] sm:$0xff]
        %v997 = vld [vmem:[#allocation8 + $0x1b0] sm:$0xff]
        %v998 = vld [vmem:[#allocation8 + $0x1b8] sm:$0xff]
        %v999 = vld [vmem:[#allocation8 + $0x1c0] sm:$0xff]
        %v1000 = vld [vmem:[#allocation8 + $0x1c8] sm:$0xff]
        %v1001 = vld [vmem:[#allocation8 + $0x1d0] sm:$0xff]
        %v1002 = vld [vmem:[#allocation8 + $0x1d8] sm:$0xff]
        %v1003 = vld [vmem:[#allocation8 + $0x1e0] sm:$0xff]
        %v1004 = vld [vmem:[#allocation8 + $0x1e8] sm:$0xff]
        %v1005 = vld [vmem:[#allocation8 + $0x1f0] sm:$0xff]
        %v1006 = vld [vmem:[#allocation8 + $0x1f8] sm:$0xff]
        %1007 = vmatpush.msra.mxu0 %v973
        %1008 = vmatpush.msra.mxu0 %v971
        %1009 = vmatpush.msra.mxu0 %v969
        %1010 = vmatpush.msra.mxu0 %v967
        %1011 = vmatpush.msra.mxu0 %v965
        %1012 = vmatpush.msra.mxu0 %v963
        %1013 = vmatpush.msra.mxu0 %v961
        %1014 = vmatpush.msra.mxu0 %v959
        %1015 = vmatpush.msra.mxu0 %v957
        %1016 = vmatpush.msra.mxu0 %v955
        %1017 = vmatpush.msra.mxu0 %v953
        %1018 = vmatpush.msra.mxu0 %v951
        %1019 = vmatpush.msra.mxu0 %v949
        %1020 = vmatpush.msra.mxu0 %v947
        %1021 = vmatpush.msra.mxu0 %v945
        %1022 = vmatpush.msra.mxu0 %v943
        %1023 = vmatmul.f32.gmra.mxu0 %v921
        %v1024 = vpop.f32.mrf.mxu0
        %v1025 = vadd.f32 0.0, %v1024
        %1026 = vdwg.mxu0
        %1027 = vmatpush.msra.mxu0 %v1005
        %1028 = vmatpush.msra.mxu0 %v1003
        %1029 = vmatpush.msra.mxu0 %v1001
        %1030 = vmatpush.msra.mxu0 %v999
        %1031 = vmatpush.msra.mxu0 %v997
        %1032 = vmatpush.msra.mxu0 %v995
        %1033 = vmatpush.msra.mxu0 %v993
        %1034 = vmatpush.msra.mxu0 %v991
        %1035 = vmatpush.msra.mxu0 %v989
        %1036 = vmatpush.msra.mxu0 %v987
        %1037 = vmatpush.msra.mxu0 %v985
        %1038 = vmatpush.msra.mxu0 %v983
        %1039 = vmatpush.msra.mxu0 %v981
        %1040 = vmatpush.msra.mxu0 %v979
        %1041 = vmatpush.msra.mxu0 %v977
        %1042 = vmatpush.msra.mxu0 %v975
        %1043 = vmatmul.f32.gmra.mxu0 %v941
        %v1044 = vpop.f32.mrf.mxu0
        %v1045 = vadd.f32 %v1025, %v1044
        %1046 = vdwg.mxu0
        %1047 = vmatpush.msra.mxu0 %v974
        %1048 = vmatpush.msra.mxu0 %v972
        %1049 = vmatpush.msra.mxu0 %v970
        %1050 = vmatpush.msra.mxu0 %v968
        %1051 = vmatpush.msra.mxu0 %v966
        %1052 = vmatpush.msra.mxu0 %v964
        %1053 = vmatpush.msra.mxu0 %v962
        %1054 = vmatpush.msra.mxu0 %v960
        %1055 = vmatpush.msra.mxu0 %v958
        %1056 = vmatpush.msra.mxu0 %v956
        %1057 = vmatpush.msra.mxu0 %v954
        %1058 = vmatpush.msra.mxu0 %v952
        %1059 = vmatpush.msra.mxu0 %v950
        %1060 = vmatpush.msra.mxu0 %v948
        %1061 = vmatpush.msra.mxu0 %v946
        %1062 = vmatpush.msra.mxu0 %v944
        %1063 = vmatmul.f32.gmra.mxu0 %v921
        %v1064 = vpop.f32.mrf.mxu0
        %v1065 = vadd.f32 0.0, %v1064
        %1066 = vdwg.mxu0
        %1067 = vmatpush.msra.mxu0 %v1006
        %1068 = vmatpush.msra.mxu0 %v1004
        %1069 = vmatpush.msra.mxu0 %v1002
        %1070 = vmatpush.msra.mxu0 %v1000
        %1071 = vmatpush.msra.mxu0 %v998
        %1072 = vmatpush.msra.mxu0 %v996
        %1073 = vmatpush.msra.mxu0 %v994
        %1074 = vmatpush.msra.mxu0 %v992
        %1075 = vmatpush.msra.mxu0 %v990
        %1076 = vmatpush.msra.mxu0 %v988
        %1077 = vmatpush.msra.mxu0 %v986
        %1078 = vmatpush.msra.mxu0 %v984
        %1079 = vmatpush.msra.mxu0 %v982
        %1080 = vmatpush.msra.mxu0 %v980
        %1081 = vmatpush.msra.mxu0 %v978
        %1082 = vmatpush.msra.mxu0 %v976
        %1083 = vmatmul.f32.gmra.mxu0 %v941
        %v1084 = vpop.f32.mrf.mxu0
        %v1085 = vadd.f32 %v1065, %v1084
        %1086 = vdwg.mxu0
        %1087 = vmatpush.msra.mxu0 %v869
        %1088 = vmatpush.msra.mxu0 %v867
        %1089 = vmatpush.msra.mxu0 %v865
        %1090 = vmatpush.msra.mxu0 %v863
        %1091 = vmatpush.msra.mxu0 %v861
        %1092 = vmatpush.msra.mxu0 %v859
        %1093 = vmatpush.msra.mxu0 %v857
        %1094 = vmatpush.msra.mxu0 %v855
        %1095 = vmatpush.msra.mxu0 %v853
        %1096 = vmatpush.msra.mxu0 %v851
        %1097 = vmatpush.msra.mxu0 %v849
        %1098 = vmatpush.msra.mxu0 %v847
        %1099 = vmatpush.msra.mxu0 %v845
        %1100 = vmatpush.msra.mxu0 %v843
        %1101 = vmatpush.msra.mxu0 %v841
        %1102 = vmatpush.msra.mxu0 %v839
        %1103 = vmatmul.f32.gmra.mxu0 %v836
        %v1104 = vpop.f32.mrf.mxu0
        %v1105 = vadd.f32 %v1045, %v1104
        %1106 = vdwg.mxu0
        %1107 = vmatpush.msra.mxu0 %v901
        %1108 = vmatpush.msra.mxu0 %v899
        %1109 = vmatpush.msra.mxu0 %v897
        %1110 = vmatpush.msra.mxu0 %v895
        %1111 = vmatpush.msra.mxu0 %v893
        %1112 = vmatpush.msra.mxu0 %v891
        %1113 = vmatpush.msra.mxu0 %v889
        %1114 = vmatpush.msra.mxu0 %v887
        %1115 = vmatpush.msra.mxu0 %v885
        %1116 = vmatpush.msra.mxu0 %v883
        %1117 = vmatpush.msra.mxu0 %v881
        %1118 = vmatpush.msra.mxu0 %v879
        %1119 = vmatpush.msra.mxu0 %v877
        %1120 = vmatpush.msra.mxu0 %v875
        %1121 = vmatpush.msra.mxu0 %v873
        %1122 = vmatpush.msra.mxu0 %v871
        %1123 = vmatmul.f32.gmra.mxu0 %v837
        %v1124 = vpop.f32.mrf.mxu0
        %v1125 = vadd.f32 %v1105, %v1124
        %1126 = vdwg.mxu0
        %1127 = vmatpush.msra.mxu0 %v870
        %1128 = vmatpush.msra.mxu0 %v868
        %1129 = vmatpush.msra.mxu0 %v866
        %1130 = vmatpush.msra.mxu0 %v864
        %1131 = vmatpush.msra.mxu0 %v862
        %1132 = vmatpush.msra.mxu0 %v860
        %1133 = vmatpush.msra.mxu0 %v858
        %1134 = vmatpush.msra.mxu0 %v856
        %1135 = vmatpush.msra.mxu0 %v854
        %1136 = vmatpush.msra.mxu0 %v852
        %1137 = vmatpush.msra.mxu0 %v850
        %1138 = vmatpush.msra.mxu0 %v848
        %1139 = vmatpush.msra.mxu0 %v846
        %1140 = vmatpush.msra.mxu0 %v844
        %1141 = vmatpush.msra.mxu0 %v842
        %1142 = vmatpush.msra.mxu0 %v840
        %1143 = vmatmul.f32.gmra.mxu0 %v836
        %v1144 = vpop.f32.mrf.mxu0
        %v1145 = vadd.f32 %v1085, %v1144
        %1146 = vdwg.mxu0
        %1147 = vmatpush.msra.mxu0 %v902
        %1148 = vmatpush.msra.mxu0 %v900
        %1149 = vmatpush.msra.mxu0 %v898
        %1150 = vmatpush.msra.mxu0 %v896
        %1151 = vmatpush.msra.mxu0 %v894
        %1152 = vmatpush.msra.mxu0 %v892
        %1153 = vmatpush.msra.mxu0 %v890
        %1154 = vmatpush.msra.mxu0 %v888
        %1155 = vmatpush.msra.mxu0 %v886
        %1156 = vmatpush.msra.mxu0 %v884
        %1157 = vmatpush.msra.mxu0 %v882
        %1158 = vmatpush.msra.mxu0 %v880
        %1159 = vmatpush.msra.mxu0 %v878
        %1160 = vmatpush.msra.mxu0 %v876
        %1161 = vmatpush.msra.mxu0 %v874
        %1162 = vmatpush.msra.mxu0 %v872
        %1163 = vmatmul.f32.gmra.mxu0 %v837
        %v1164 = vpop.f32.mrf.mxu0
        %v1165 = vadd.f32 %v1145, %v1164
        %1166 = vdwg.mxu0
        %1167 = vmatpush.msra.mxu0 0.0
        %1168 = vmatpush.msra.mxu0 0.0
        %1169 = vmatpush.msra.mxu0 0.0
        %1170 = vmatpush.msra.mxu0 0.0
        %1171 = vmatpush.msra.mxu0 0.0
        %1172 = vmatpush.msra.mxu0 0.0
        %1173 = vmatpush.msra.mxu0 0.0
        %1174 = vmatpush.msra.mxu0 0.0
        %1175 = vmatpush.msra.mxu0 0.0
        %1176 = vmatpush.msra.mxu0 0.0
        %1177 = vmatpush.msra.mxu0 0.0
        %1178 = vmatpush.msra.mxu0 0.0
        %1179 = vmatpush.msra.mxu0 0.0
        %1180 = vmatpush.msra.mxu0 0.0
        %1181 = vmatpush.msra.mxu0 0.0
        %1182 = vmatpush.msra.mxu0 %v836
        %1183 = vmatmul.f32.gmra.mxu0 %v639
        %v1184 = vpop.f32.mrf.mxu0
        %v1185 = vadd.f32 0.0, %v1184
        %1186 = vdwg.mxu0
        %1187 = vmatpush.msra.mxu0 0.0
        %1188 = vmatpush.msra.mxu0 0.0
        %1189 = vmatpush.msra.mxu0 0.0
        %1190 = vmatpush.msra.mxu0 0.0
        %1191 = vmatpush.msra.mxu0 0.0
        %1192 = vmatpush.msra.mxu0 0.0
        %1193 = vmatpush.msra.mxu0 0.0
        %1194 = vmatpush.msra.mxu0 0.0
        %1195 = vmatpush.msra.mxu0 0.0
        %1196 = vmatpush.msra.mxu0 0.0
        %1197 = vmatpush.msra.mxu0 0.0
        %1198 = vmatpush.msra.mxu0 0.0
        %1199 = vmatpush.msra.mxu0 0.0
        %1200 = vmatpush.msra.mxu0 0.0
        %1201 = vmatpush.msra.mxu0 0.0
        %1202 = vmatpush.msra.mxu0 %v837
        %1203 = vmatmul.f32.gmra.mxu0 %v639
        %v1204 = vpop.f32.mrf.mxu0
        %v1205 = vadd.f32 0.0, %v1204
        %1206 = vdwg.mxu0
        %s1207 = scalar_lea.vmem [#allocation8], 1024
        %v1208 = vld [vmem:[%s1207] sm:$0xff]
        %v1209 = vld [vmem:[%s1207 + $0x8] sm:$0xff]
        %v1210 = vld [vmem:[%s1207 + $0x10] sm:$0xff]
        %v1211 = vld [vmem:[%s1207 + $0x18] sm:$0xff]
        %v1212 = vld [vmem:[%s1207 + $0x20] sm:$0xff]
        %v1213 = vld [vmem:[%s1207 + $0x28] sm:$0xff]
        %v1214 = vld [vmem:[%s1207 + $0x30] sm:$0xff]
        %v1215 = vld [vmem:[%s1207 + $0x38] sm:$0xff]
        %v1216 = vld [vmem:[%s1207 + $0x40] sm:$0xff]
        %v1217 = vld [vmem:[%s1207 + $0x48] sm:$0xff]
        %v1218 = vld [vmem:[%s1207 + $0x50] sm:$0xff]
        %v1219 = vld [vmem:[%s1207 + $0x58] sm:$0xff]
        %v1220 = vld [vmem:[%s1207 + $0x60] sm:$0xff]
        %v1221 = vld [vmem:[%s1207 + $0x68] sm:$0xff]
        %v1222 = vld [vmem:[%s1207 + $0x70] sm:$0xff]
        %v1223 = vld [vmem:[%s1207 + $0x78] sm:$0xff]
        %v1224 = vld [vmem:[%s1207 + $0x80] sm:$0xff]
        %v1225 = vld [vmem:[%s1207 + $0x88] sm:$0xff]
        %v1226 = vld [vmem:[%s1207 + $0x90] sm:$0xff]
        %v1227 = vld [vmem:[%s1207 + $0x98] sm:$0xff]
        %v1228 = vld [vmem:[%s1207 + $0xa0] sm:$0xff]
        %v1229 = vld [vmem:[%s1207 + $0xa8] sm:$0xff]
        %v1230 = vld [vmem:[%s1207 + $0xb0] sm:$0xff]
        %v1231 = vld [vmem:[%s1207 + $0xb8] sm:$0xff]
        %v1232 = vld [vmem:[%s1207 + $0xc0] sm:$0xff]
        %v1233 = vld [vmem:[%s1207 + $0xc8] sm:$0xff]
        %v1234 = vld [vmem:[%s1207 + $0xd0] sm:$0xff]
        %v1235 = vld [vmem:[%s1207 + $0xd8] sm:$0xff]
        %v1236 = vld [vmem:[%s1207 + $0xe0] sm:$0xff]
        %v1237 = vld [vmem:[%s1207 + $0xe8] sm:$0xff]
        %v1238 = vld [vmem:[%s1207 + $0xf0] sm:$0xff]
        %v1239 = vld [vmem:[%s1207 + $0xf8] sm:$0xff]
        %v1240 = vld [vmem:[%s1207 + $0x100] sm:$0xff]
        %v1241 = vld [vmem:[%s1207 + $0x108] sm:$0xff]
        %v1242 = vld [vmem:[%s1207 + $0x110] sm:$0xff]
        %v1243 = vld [vmem:[%s1207 + $0x118] sm:$0xff]
        %v1244 = vld [vmem:[%s1207 + $0x120] sm:$0xff]
        %v1245 = vld [vmem:[%s1207 + $0x128] sm:$0xff]
        %v1246 = vld [vmem:[%s1207 + $0x130] sm:$0xff]
        %v1247 = vld [vmem:[%s1207 + $0x138] sm:$0xff]
        %v1248 = vld [vmem:[%s1207 + $0x140] sm:$0xff]
        %v1249 = vld [vmem:[%s1207 + $0x148] sm:$0xff]
        %v1250 = vld [vmem:[%s1207 + $0x150] sm:$0xff]
        %v1251 = vld [vmem:[%s1207 + $0x158] sm:$0xff]
        %v1252 = vld [vmem:[%s1207 + $0x160] sm:$0xff]
        %v1253 = vld [vmem:[%s1207 + $0x168] sm:$0xff]
        %v1254 = vld [vmem:[%s1207 + $0x170] sm:$0xff]
        %v1255 = vld [vmem:[%s1207 + $0x178] sm:$0xff]
        %v1256 = vld [vmem:[%s1207 + $0x180] sm:$0xff]
        %v1257 = vld [vmem:[%s1207 + $0x188] sm:$0xff]
        %v1258 = vld [vmem:[%s1207 + $0x190] sm:$0xff]
        %v1259 = vld [vmem:[%s1207 + $0x198] sm:$0xff]
        %v1260 = vld [vmem:[%s1207 + $0x1a0] sm:$0xff]
        %v1261 = vld [vmem:[%s1207 + $0x1a8] sm:$0xff]
        %v1262 = vld [vmem:[%s1207 + $0x1b0] sm:$0xff]
        %v1263 = vld [vmem:[%s1207 + $0x1b8] sm:$0xff]
        %v1264 = vld [vmem:[%s1207 + $0x1c0] sm:$0xff]
        %v1265 = vld [vmem:[%s1207 + $0x1c8] sm:$0xff]
        %v1266 = vld [vmem:[%s1207 + $0x1d0] sm:$0xff]
        %v1267 = vld [vmem:[%s1207 + $0x1d8] sm:$0xff]
        %v1268 = vld [vmem:[%s1207 + $0x1e0] sm:$0xff]
        %v1269 = vld [vmem:[%s1207 + $0x1e8] sm:$0xff]
        %v1270 = vld [vmem:[%s1207 + $0x1f0] sm:$0xff]
        %v1271 = vld [vmem:[%s1207 + $0x1f8] sm:$0xff]
        %1272 = vmatpush.msra.mxu0 %v1238
        %1273 = vmatpush.msra.mxu0 %v1236
        %1274 = vmatpush.msra.mxu0 %v1234
        %1275 = vmatpush.msra.mxu0 %v1232
        %1276 = vmatpush.msra.mxu0 %v1230
        %1277 = vmatpush.msra.mxu0 %v1228
        %1278 = vmatpush.msra.mxu0 %v1226
        %1279 = vmatpush.msra.mxu0 %v1224
        %1280 = vmatpush.msra.mxu0 %v1222
        %1281 = vmatpush.msra.mxu0 %v1220
        %1282 = vmatpush.msra.mxu0 %v1218
        %1283 = vmatpush.msra.mxu0 %v1216
        %1284 = vmatpush.msra.mxu0 %v1214
        %1285 = vmatpush.msra.mxu0 %v1212
        %1286 = vmatpush.msra.mxu0 %v1210
        %1287 = vmatpush.msra.mxu0 %v1208
        %1288 = vmatmul.f32.gmra.mxu0 %v1185
        %v1289 = vpop.f32.mrf.mxu0
        %v1290 = vadd.f32 0.0, %v1289
        %1291 = vdwg.mxu0
        %1292 = vmatpush.msra.mxu0 %v1270
        %1293 = vmatpush.msra.mxu0 %v1268
        %1294 = vmatpush.msra.mxu0 %v1266
        %1295 = vmatpush.msra.mxu0 %v1264
        %1296 = vmatpush.msra.mxu0 %v1262
        %1297 = vmatpush.msra.mxu0 %v1260
        %1298 = vmatpush.msra.mxu0 %v1258
        %1299 = vmatpush.msra.mxu0 %v1256
        %1300 = vmatpush.msra.mxu0 %v1254
        %1301 = vmatpush.msra.mxu0 %v1252
        %1302 = vmatpush.msra.mxu0 %v1250
        %1303 = vmatpush.msra.mxu0 %v1248
        %1304 = vmatpush.msra.mxu0 %v1246
        %1305 = vmatpush.msra.mxu0 %v1244
        %1306 = vmatpush.msra.mxu0 %v1242
        %1307 = vmatpush.msra.mxu0 %v1240
        %1308 = vmatmul.f32.gmra.mxu0 %v1205
        %v1309 = vpop.f32.mrf.mxu0
        %v1310 = vadd.f32 %v1290, %v1309
        %1311 = vdwg.mxu0
        %1312 = vmatpush.msra.mxu0 %v1239
        %1313 = vmatpush.msra.mxu0 %v1237
        %1314 = vmatpush.msra.mxu0 %v1235
        %1315 = vmatpush.msra.mxu0 %v1233
        %1316 = vmatpush.msra.mxu0 %v1231
        %1317 = vmatpush.msra.mxu0 %v1229
        %1318 = vmatpush.msra.mxu0 %v1227
        %1319 = vmatpush.msra.mxu0 %v1225
        %1320 = vmatpush.msra.mxu0 %v1223
        %1321 = vmatpush.msra.mxu0 %v1221
        %1322 = vmatpush.msra.mxu0 %v1219
        %1323 = vmatpush.msra.mxu0 %v1217
        %1324 = vmatpush.msra.mxu0 %v1215
        %1325 = vmatpush.msra.mxu0 %v1213
        %1326 = vmatpush.msra.mxu0 %v1211
        %1327 = vmatpush.msra.mxu0 %v1209
        %1328 = vmatmul.f32.gmra.mxu0 %v1185
        %v1329 = vpop.f32.mrf.mxu0
        %v1330 = vadd.f32 0.0, %v1329
        %1331 = vdwg.mxu0
        %1332 = vmatpush.msra.mxu0 %v1271
        %1333 = vmatpush.msra.mxu0 %v1269
        %1334 = vmatpush.msra.mxu0 %v1267
        %1335 = vmatpush.msra.mxu0 %v1265
        %1336 = vmatpush.msra.mxu0 %v1263
        %1337 = vmatpush.msra.mxu0 %v1261
        %1338 = vmatpush.msra.mxu0 %v1259
        %1339 = vmatpush.msra.mxu0 %v1257
        %1340 = vmatpush.msra.mxu0 %v1255
        %1341 = vmatpush.msra.mxu0 %v1253
        %1342 = vmatpush.msra.mxu0 %v1251
        %1343 = vmatpush.msra.mxu0 %v1249
        %1344 = vmatpush.msra.mxu0 %v1247
        %1345 = vmatpush.msra.mxu0 %v1245
        %1346 = vmatpush.msra.mxu0 %v1243
        %1347 = vmatpush.msra.mxu0 %v1241
        %1348 = vmatmul.f32.gmra.mxu0 %v1205
        %v1349 = vpop.f32.mrf.mxu0
        %v1350 = vadd.f32 %v1330, %v1349
        %1351 = vdwg.mxu0
        %v1352 = vadd.f32 %v1125, %v1310
        %v1353 = vadd.f32 %v1165, %v1350
        %v1354 = vld [vmem:[%s4] sm:$0x3]
        %v1356 = vperm.slane %v1354, 0
        %v1357 = vperm.slane %v1354, 1
        %v1360 = vadd.f32 %v1352, %v1356
        %v1361 = vadd.f32 %v1353, %v1357
        %v1362 = vadd.f32 %v1360, %v303
        %v1363 = vadd.f32 %v1361, %v304
        %v1364 = vmax.f32 %v1362, 0.0
        %v1365 = vmax.f32 %v1363, 0.0
        %1366 = vst [vmem:[%s290] sm:$0xff] %v1364
        %1367 = vst [vmem:[%s290 + $0x8] sm:$0xff] %v1365
        %s1368 = sand.u32 %s142, 1
        %s1369 = scalar_lea.sflag [#allocation4], %s1368
        %s1370 = sand.u32 %s142, 1
        %s1371 = smul.addr %s1370, 16
        %s1372 = scalar_lea.vmem [#allocation10], %s1371
        // Predicated region
        $region57: #{tpu_custom_call.1} parent=39 // pred_check
          %p1373 = pneg %p152
        $region58: #{tpu_custom_call.1} parent=39 // pred_check_branch
          %1375 = sbr.rel (%p1373) target = $region60
        $region59: #{tpu_custom_call.1} parent=39 // pred_region
          %1377 = vsyncadd %s1369, 0
          %s1378 = smul.addr %s24, 2
          %s1379 = smul.addr %s1378, 8
          %s1380 = scalar_lea.hbm %s5, %s1379
          %s1382 = sshll.u32 %s1372, 4
          %s1383 = int_to_ptr.vmem [resolvable:$true] %s1382
          %s1384 = sshll.u32 %s1380, 4
          %s1385 = int_to_ptr.hbm [resolvable:$true] %s1384
          %1387 = dma.vmem_to_hbm [thread:$0]  %s1383, 256, %s1385, %s1369
        $region60: #{tpu_custom_call.1} parent=39 // pred_fallthru
          _
      $region40: #{tpu_custom_call.1} parent=5 // pred_fallthru
        _
      %p1388 = scmp.le.s32.totalorder 2, %s19
      // Predicated region
      $region61: #{tpu_custom_call.1} parent=5 // pred_check
        %p1389 = pneg %p1388
      $region62: #{tpu_custom_call.1} parent=5 // pred_check_branch
        %1391 = sbr.rel (%p1389) target = $region64
      $region63: #{tpu_custom_call.1} parent=5 // pred_region
        %s1392 = ssub.s32 %s19, 2
        // Predicated region
        $region65: #{tpu_custom_call.1} parent=63 // pred_check
          %p1393 = pneg %p158
        $region66: #{tpu_custom_call.1} parent=63 // pred_check_branch
          %1395 = sbr.rel (%p1393) target = $region68
        $region67: #{tpu_custom_call.1} parent=63 // pred_region
          %s1396 = sand.u32 %s143, 1
          %s1397 = scalar_lea.sflag [#allocation4], %s1396
          %s1398 = sand.u32 %s143, 1
          %s1399 = smul.addr %s1398, 16
          %s1400 = scalar_lea.vmem [#allocation10], %s1399
          %1402 = dma.done %s1397, 256
        $region68: #{tpu_custom_call.1} parent=63 // pred_fallthru
          _
      $region64: #{tpu_custom_call.1} parent=5 // pred_fallthru
        _
    $region6: #{tpu_custom_call.1} parent=1 // loop_footer
      %s23 = sadd.s32 1, %s19
    $region7: #{tpu_custom_call.1} parent=1 // loop_footer_branch
      %18 = sbr.rel target = $region3
    $region8: #{tpu_custom_call.1} parent=1 // loop_exit
      _
    %1403 = vsyncpa [#allocation3], 1
    %s1404 = scalar_lea.sflag [#allocation3], 1
    %1405 = vsyncpa %s1404, 1
    %1406 = vsyncpa [#allocation6], 1
    %1407 = vsyncpa [#allocation9], 1
    %1408 = vsyncpa [#allocation4], 1
    %s1409 = scalar_lea.sflag [#allocation4], 1
    %1410 = vsyncpa %s1409, 1

</llo_original>
